<compile_context>
chip_gen: v5e
topology: v5e:2x2
jax: 0.10.0
libtpu: 0.0.40
codegen_flags: <defaults>
</compile_context>

<pallas_src>
import math

import jax
import jax.numpy as jnp
from jax.experimental import pallas as pl
from jax.experimental.pallas import tpu as pltpu


# -----------------------------------------------------------------------------
# Kernel: fused signed-selection MXU gather + p=2 norm reduce.
#   idx_ref : (3, TB) int32  — row 0: head row, row 1: pos-tail row, row 2:
#             neg-tail row (tail rows already offset by n_entities in wrapper).
#   tab_ref : (D, n_rows) f32 — stacked [entity | concept] table, transposed,
#             fully resident in VMEM (block index never changes).
#   out_ref : (2, TB) f32   — row 0: positive scores, row 1: negative scores.
# -----------------------------------------------------------------------------
def _cross_view_kernel(idx_ref, tab_ref, out_ref):
    idx = idx_ref[...]                       # (3, TB) int32
    tab_t = tab_ref[...]                     # (D, n_rows) f32 (no per-step cast)
    n_rows = tab_t.shape[1]
    tb = idx.shape[1]

    # Signed selection matrices, batch on the lane axis.
    rows = jax.lax.broadcasted_iota(jnp.int32, (n_rows, tb), 0)
    h_oh = (rows == idx[0:1, :]).astype(jnp.float32)               # (n_rows, TB)
    sel_pos = (rows == idx[1:2, :]).astype(jnp.float32) - h_oh     # t_oh - h_oh
    sel_neg = (rows == idx[2:3, :]).astype(jnp.float32) - h_oh     # nt_oh - h_oh
    sel = jnp.concatenate([sel_pos, sel_neg], axis=1)              # (n_rows, 2*TB)

    # One MXU matmul: (D, n_rows) @ (n_rows, 2*TB) -> (D, 2*TB) = [t-h | nt-h].
    diff = jnp.dot(tab_t, sel,
                   preferred_element_type=jnp.float32,
                   precision=jax.lax.Precision.HIGHEST)

    # p = 2 distance over the embedding (sublane) axis -> (1, 2*TB) lane-dense.
    score = jnp.sqrt(jnp.sum(diff * diff, axis=0, keepdims=True))
    # Row 0 = positive scores, row 1 = negative scores.
    out_ref[...] = jnp.concatenate([score[:, :tb], score[:, tb:]], axis=0)


def cross_view_forward(ent_emb, con_emb, rel_emb,
                       heads, tails, relations,
                       negative_heads, negative_tails, negative_relations=None,
                       *, tb=512):
    """Returns (pos_scores, neg_scores), each shape (batch,), float32."""
    del rel_emb, relations, negative_heads, negative_relations  # unused by base score
    b = heads.shape[0]
    n_ent, dim = ent_emb.shape
    n_con, con_dim = con_emb.shape
    assert con_dim == dim, "entity_dim and concept_dim must match for ||t - h||_p"
    n_rows = n_ent + n_con

    # Batch tile: multiple of 128 lanes, capped at 512, no over-padding tiny batches.
    tb = max(128, min(int(tb), ((b + 127) // 128) * 128))
    tb = ((tb + 127) // 128) * 128
    b_pad = ((b + tb - 1) // tb) * tb
    n_tiles = b_pad // tb

    # Stacked index tile: row 0 heads (entity rows), rows 1/2 pos/neg tails
    # offset into the concept half of the stacked table. Pad rows select valid
    # rows and are sliced off below.
    def pad(x):
        return jnp.pad(x.astype(jnp.int32), (0, b_pad - b))

    idx = jnp.stack([pad(heads), pad(tails) + n_ent, pad(negative_tails) + n_ent],
                    axis=0)                                           # (3, b_pad)

    # Stacked + transposed table, cast to f32 ONCE here (not per grid step).
    # TODO(synk): keep parameters stored in this layout to avoid the per-call
    # transpose/concat HBM traffic.
    table_t = jnp.concatenate([ent_emb, con_emb], axis=0).astype(jnp.float32).T  # (dim, n_rows)

    # Explicit VMEM budget: single-buffered table + double-buffered tiles +
    # selection/diff working set + slack.
    table_bytes = dim * n_rows * 4
    tile_io_bytes = 2 * (3 * tb + 2 * tb) * 4
    work_bytes = (4 * n_rows * 2 * tb + 2 * dim * 2 * tb) * 4
    vmem_limit = min(max(table_bytes + tile_io_bytes + work_bytes + (4 << 20),
                         32 << 20), 100 << 20)

    def _make_call(table_pipeline_mode):
        table_spec_kwargs = {}
        if table_pipeline_mode is not None:
            table_spec_kwargs["pipeline_mode"] = table_pipeline_mode
        grid_spec = pltpu.PrefetchScalarGridSpec(
            num_scalar_prefetch=0,
            grid=(n_tiles,),
            in_specs=[
                pl.BlockSpec((3, tb), lambda i: (0, i)),                  # stacked indices
                pl.BlockSpec((dim, n_rows), lambda i: (0, 0),             # resident stacked table
                             **table_spec_kwargs),
            ],
            out_specs=pl.BlockSpec((2, tb), lambda i: (0, i)),            # stacked pos/neg scores
        )
        return pl.pallas_call(
            _cross_view_kernel,
            grid_spec=grid_spec,
            out_shape=jax.ShapeDtypeStruct((2, b_pad), jnp.float32),
            compiler_params=pltpu.CompilerParams(
                # TODO(synk): try pltpu.CORE_PARALLEL on v7x to force 2-TC sharding.
                dimension_semantics=("parallel",),
                vmem_limit_bytes=vmem_limit,
            ),
        )

    try:
        # Single-buffer the grid-invariant table (halves its VMEM footprint).
        scores = _make_call(pl.Buffered(1))(idx, table_t)
    except Exception:
        # Fallback if this Pallas build rejects single-buffered block specs.
        scores = _make_call(None)(idx, table_t)

    return scores[0, :b], scores[1, :b]


# -----------------------------------------------------------------------------
# Deterministic parameter init (xavier_uniform_, matching torch semantics).
# -----------------------------------------------------------------------------
def xavier_uniform(key, shape, dtype=jnp.float32):
    fan_out, fan_in = shape  # torch: fan_in = size(1), fan_out = size(0)
    bound = math.sqrt(6.0 / (fan_in + fan_out))
    return jax.random.uniform(key, shape, dtype=dtype, minval=-bound, maxval=bound)


def reference_forward(ent_emb, con_emb, heads, tails, negative_tails):
    h = ent_emb[heads]
    t = con_emb[tails]
    nt = con_emb[negative_tails]
    pos = jnp.linalg.norm(t - h, ord=2, axis=-1)
    neg = jnp.linalg.norm(nt - h, ord=2, axis=-1)
    return pos, neg


if __name__ == "__main__":
    n_entities, n_concepts = 32, 16
    entity_dim = concept_dim = 128
    batch = 8

    key = jax.random.PRNGKey(0)
    k_ent, k_con, k_rel, k_h, k_t, k_nh, k_nt = jax.random.split(key, 7)

    ent_emb = xavier_uniform(k_ent, (n_entities, entity_dim))
    con_emb = xavier_uniform(k_con, (n_concepts, concept_dim))
    rel_emb = xavier_uniform(k_rel, (1, entity_dim))

    heads = jax.random.randint(k_h, (batch,), 0, n_entities)
    tails = jax.random.randint(k_t, (batch,), 0, n_concepts)
    relations = jnp.zeros((batch,), dtype=jnp.int32)          # single meta-relation
    negative_heads = jax.random.randint(k_nh, (batch,), 0, n_entities)
    negative_tails = jax.random.randint(k_nt, (batch,), 0, n_concepts)

    pos, neg = cross_view_forward(
        ent_emb, con_emb, rel_emb,
        heads, tails, relations, negative_heads, negative_tails,
    )
    jax.block_until_ready((pos, neg))

    ref_pos, ref_neg = reference_forward(ent_emb, con_emb, heads, tails, negative_tails)
    assert pos.shape == (batch,) and neg.shape == (batch,)
    assert jnp.allclose(pos, ref_pos, atol=1e-5, rtol=1e-5)
    assert jnp.allclose(neg, ref_neg, atol=1e-5, rtol=1e-5)

    print("KERNEL_OK")
</pallas_src>

<mosaic_0001>
module attributes {stable_mosaic.version = 11 : i64} {
  func.func @_cross_view_kernel(%arg0: i32, %arg1: memref<3x128xi32, #tpu.memory_space<vmem>>, %arg2: memref<128x48xf32, #tpu.memory_space<vmem>>, %arg3: memref<2x128xf32, #tpu.memory_space<vmem>>) attributes {dimension_semantics = [#tpu.dimension_semantics<parallel>], iteration_bounds = array<i64: 1>, scalar_prefetch = 0 : i64, scratch_operands = 0 : i64, tpu.core_type = #tpu.core_type<tc>, window_params = [{transform_indices = @transform_0, window_bounds = array<i64: 3, 128>}, {pipeline_mode = #tpu.pipeline_mode<synchronous>, transform_indices = @transform_1, window_bounds = array<i64: 128, 48>}, {transform_indices = @transform_2, window_bounds = array<i64: 2, 128>}]} {
    %c0 = arith.constant 0 : index
    %c0_0 = arith.constant 0 : index
    %0 = vector.load %arg1[%c0, %c0_0] : memref<3x128xi32, #tpu.memory_space<vmem>>, vector<3x128xi32>
    %c0_1 = arith.constant 0 : index
    %c0_2 = arith.constant 0 : index
    %1 = vector.load %arg2[%c0_1, %c0_2] : memref<128x48xf32, #tpu.memory_space<vmem>>, vector<128x48xf32>
    %2 = tpu.iota {dimensions = array<i32: 0>} : vector<48x128xi32>
    %3 = vector.extract_strided_slice %0 {offsets = [0, 0], sizes = [1, 128], strides = [1, 1]} : vector<3x128xi32> to vector<1x128xi32>
    %4 = vector.broadcast %3 : vector<1x128xi32> to vector<48x128xi32>
    %5 = arith.cmpi eq, %2, %4 : vector<48x128xi32>
    %6 = arith.extui %5 : vector<48x128xi1> to vector<48x128xi32>
    %7 = arith.sitofp %6 : vector<48x128xi32> to vector<48x128xf32>
    %8 = vector.extract_strided_slice %0 {offsets = [1, 0], sizes = [1, 128], strides = [1, 1]} : vector<3x128xi32> to vector<1x128xi32>
    %9 = vector.broadcast %8 : vector<1x128xi32> to vector<48x128xi32>
    %10 = arith.cmpi eq, %2, %9 : vector<48x128xi32>
    %11 = arith.extui %10 : vector<48x128xi1> to vector<48x128xi32>
    %12 = arith.sitofp %11 : vector<48x128xi32> to vector<48x128xf32>
    %13 = arith.subf %12, %7 : vector<48x128xf32>
    %14 = vector.extract_strided_slice %0 {offsets = [2, 0], sizes = [1, 128], strides = [1, 1]} : vector<3x128xi32> to vector<1x128xi32>
    %15 = vector.broadcast %14 : vector<1x128xi32> to vector<48x128xi32>
    %16 = arith.cmpi eq, %2, %15 : vector<48x128xi32>
    %17 = arith.extui %16 : vector<48x128xi1> to vector<48x128xi32>
    %18 = arith.sitofp %17 : vector<48x128xi32> to vector<48x128xf32>
    %19 = arith.subf %18, %7 : vector<48x128xf32>
    %20 = tpu.concatenate %13, %19 in 1 : vector<48x128xf32>, vector<48x128xf32> -> vector<48x256xf32>
    %cst = arith.constant dense<0.000000e+00> : vector<128x256xf32>
    %21 = tpu.matmul %1, %20, %cst {dimension_numbers = #tpu.dot_dimension_numbers<[1], [0], [0], [1], [0, 0, 1, 1], [], []>, precision = #tpu.contract_precision<fp32>} : vector<128x48xf32>, vector<48x256xf32>, vector<128x256xf32> -> vector<128x256xf32>
    %22 = arith.mulf %21, %21 : vector<128x256xf32>
    %cst_3 = arith.constant dense<0.000000e+00> : vector<256xf32>
    %23 = vector.multi_reduction <add>, %22, %cst_3 [0] : vector<128x256xf32> to vector<256xf32>
    %24 = vector.shape_cast %23 : vector<256xf32> to vector<1x256xf32>
    %25 = math.sqrt %24 : vector<1x256xf32>
    %26 = vector.extract_strided_slice %25 {offsets = [0, 0], sizes = [1, 128], strides = [1, 1]} : vector<1x256xf32> to vector<1x128xf32>
    %27 = vector.extract_strided_slice %25 {offsets = [0, 128], sizes = [1, 128], strides = [1, 1]} : vector<1x256xf32> to vector<1x128xf32>
    %28 = tpu.concatenate %26, %27 in 0 : vector<1x128xf32>, vector<1x128xf32> -> vector<2x128xf32>
    %c0_4 = arith.constant 0 : index
    %c0_5 = arith.constant 0 : index
    %29 = vector.load %arg3[%c0_4, %c0_5] : memref<2x128xf32, #tpu.memory_space<vmem>>, vector<2x128xf32>
    tpu.vector_store %arg3[%c0_4, %c0_5], %28 {strides = array<i32>} : memref<2x128xf32, #tpu.memory_space<vmem>>, vector<2x128xf32>,
    return
  }
  func.func @transform_0(%arg0: i32) -> (i32, i32) {
    %c0_i32 = arith.constant 0 : i32
    %c0_i32_0 = arith.constant 0 : i32
    return %c0_i32, %arg0 : i32, i32
  }
  func.func @transform_1(%arg0: i32) -> (i32, i32) {
    %c0_i32 = arith.constant 0 : i32
    %c0_i32_0 = arith.constant 0 : i32
    %c0_i32_1 = arith.constant 0 : i32
    return %c0_i32, %c0_i32_0 : i32, i32
  }
  func.func @transform_2(%arg0: i32) -> (i32, i32) {
    %c0_i32 = arith.constant 0 : i32
    %c0_i32_0 = arith.constant 0 : i32
    return %c0_i32, %arg0 : i32, i32
  }
}

module attributes {stable_mosaic.version = 11 : i64} {
  func.func @_cross_view_kernel(%arg0: i32, %arg1: memref<3x128xi32, #tpu.memory_space<vmem>>, %arg2: memref<128x48xf32, #tpu.memory_space<vmem>>, %arg3: memref<2x128xf32, #tpu.memory_space<vmem>>) attributes {dimension_semantics = [#tpu.dimension_semantics<parallel>], iteration_bounds = array<i64: 1>, scalar_prefetch = 0 : i64, scratch_operands = 0 : i64, tpu.core_type = #tpu.core_type<tc>, window_params = [{transform_indices = @transform_0, window_bounds = array<i64: 3, 128>}, {pipeline_mode = #tpu.pipeline_mode<synchronous>, transform_indices = @transform_1, window_bounds = array<i64: 128, 48>}, {transform_indices = @transform_2, window_bounds = array<i64: 2, 128>}]} {
    %c0 = arith.constant 0 : index
    %c0_0 = arith.constant 0 : index
    %0 = vector.load %arg1[%c0, %c0_0] : memref<3x128xi32, #tpu.memory_space<vmem>>, vector<3x128xi32>
    %c0_1 = arith.constant 0 : index
    %c0_2 = arith.constant 0 : index
    %1 = vector.load %arg2[%c0_1, %c0_2] : memref<128x48xf32, #tpu.memory_space<vmem>>, vector<128x48xf32>
    %2 = tpu.iota {dimensions = array<i32: 0>} : vector<48x128xi32>
    %3 = vector.extract_strided_slice %0 {offsets = [0, 0], sizes = [1, 128], strides = [1, 1]} : vector<3x128xi32> to vector<1x128xi32>
    %4 = vector.broadcast %3 : vector<1x128xi32> to vector<48x128xi32>
    %5 = arith.cmpi eq, %2, %4 : vector<48x128xi32>
    %6 = arith.extui %5 : vector<48x128xi1> to vector<48x128xi32>
    %7 = arith.sitofp %6 : vector<48x128xi32> to vector<48x128xf32>
    %8 = vector.extract_strided_slice %0 {offsets = [1, 0], sizes = [1, 128], strides = [1, 1]} : vector<3x128xi32> to vector<1x128xi32>
    %9 = vector.broadcast %8 : vector<1x128xi32> to vector<48x128xi32>
    %10 = arith.cmpi eq, %2, %9 : vector<48x128xi32>
    %11 = arith.extui %10 : vector<48x128xi1> to vector<48x128xi32>
    %12 = arith.sitofp %11 : vector<48x128xi32> to vector<48x128xf32>
    %13 = arith.subf %12, %7 : vector<48x128xf32>
    %14 = vector.extract_strided_slice %0 {offsets = [2, 0], sizes = [1, 128], strides = [1, 1]} : vector<3x128xi32> to vector<1x128xi32>
    %15 = vector.broadcast %14 : vector<1x128xi32> to vector<48x128xi32>
    %16 = arith.cmpi eq, %2, %15 : vector<48x128xi32>
    %17 = arith.extui %16 : vector<48x128xi1> to vector<48x128xi32>
    %18 = arith.sitofp %17 : vector<48x128xi32> to vector<48x128xf32>
    %19 = arith.subf %18, %7 : vector<48x128xf32>
    %20 = tpu.concatenate %13, %19 in 1 : vector<48x128xf32>, vector<48x128xf32> -> vector<48x256xf32>
    %cst = arith.constant dense<0.000000e+00> : vector<128x256xf32>
    %21 = tpu.matmul %1, %20, %cst {dimension_numbers = #tpu.dot_dimension_numbers<[1], [0], [0], [1], [0, 0, 1, 1], [], []>, precision = #tpu.contract_precision<fp32>} : vector<128x48xf32>, vector<48x256xf32>, vector<128x256xf32> -> vector<128x256xf32>
    %22 = arith.mulf %21, %21 : vector<128x256xf32>
    %cst_3 = arith.constant dense<0.000000e+00> : vector<256xf32>
    %23 = vector.multi_reduction <add>, %22, %cst_3 [0] : vector<128x256xf32> to vector<256xf32>
    %24 = vector.shape_cast %23 : vector<256xf32> to vector<1x256xf32>
    %25 = math.sqrt %24 : vector<1x256xf32>
    %26 = vector.extract_strided_slice %25 {offsets = [0, 0], sizes = [1, 128], strides = [1, 1]} : vector<1x256xf32> to vector<1x128xf32>
    %27 = vector.extract_strided_slice %25 {offsets = [0, 128], sizes = [1, 128], strides = [1, 1]} : vector<1x256xf32> to vector<1x128xf32>
    %28 = tpu.concatenate %26, %27 in 0 : vector<1x128xf32>, vector<1x128xf32> -> vector<2x128xf32>
    %c0_4 = arith.constant 0 : index
    %c0_5 = arith.constant 0 : index
    %29 = vector.load %arg3[%c0_4, %c0_5] : memref<2x128xf32, #tpu.memory_space<vmem>>, vector<2x128xf32>
    tpu.vector_store %arg3[%c0_4, %c0_5], %28 {strides = array<i32>} : memref<2x128xf32, #tpu.memory_space<vmem>>, vector<2x128xf32>,
    return
  }
  func.func @transform_0(%arg0: i32) -> (i32, i32) {
    %c0_i32 = arith.constant 0 : i32
    %c0_i32_0 = arith.constant 0 : i32
    return %c0_i32, %arg0 : i32, i32
  }
  func.func @transform_1(%arg0: i32) -> (i32, i32) {
    %c0_i32 = arith.constant 0 : i32
    %c0_i32_0 = arith.constant 0 : i32
    %c0_i32_1 = arith.constant 0 : i32
    return %c0_i32, %c0_i32_0 : i32, i32
  }
  func.func @transform_2(%arg0: i32) -> (i32, i32) {
    %c0_i32 = arith.constant 0 : i32
    %c0_i32_0 = arith.constant 0 : i32
    return %c0_i32, %arg0 : i32, i32
  }
}

</mosaic_0001>

<llo_original>
// kernel: tpu_custom_call.1
$region0: #{tpu_custom_call.1}
  #allocation0 [shape = 'u32[]', space=smem, size = 0x4, offset = 0x4, fixed_abs, tag = 'smem constant byte address 0x4 - core index']
  #allocation1 [shape = 'u32[72,128]{1,0:T(1,128)}', space=vmem, size = 0x9000, scoped, tag = 'internal scratch']
  %s0 = inlined_call_operand.vmem [shape: s32[3,128], index: 0, kind: input, shape index: {}]
  %s1 = inlined_call_operand.vmem [shape: f32[128,48], index: 1, kind: input, shape index: {}]
  %s2 = inlined_call_operand.hbm [shape: f32[2,128], index: 2, kind: output, shape index: {}]
  %s3 = sld [smem:[#allocation0]]
  $region18: #{tpu_custom_call.1} parent=0
    _
  %s5 = ssub.s32 1, %s3
  %s6 = scalar_select 0, %s5, %s3
  $region1: #{tpu_custom_call.1} parent=0
    #allocation2 [shape = 'u8[1024]{0}', space=vmem, size = 0x400, scoped, tag = 'output window, operand 0, single buffered']
    #allocation3 [shape = 's32[1]{0}', space=sflag, size = 0x4, scoped, tag = 'scoped memory for tpu_custom_call.1']
    %7 = vsyncpa [#allocation3], 0
    // Predicated region
    $region2: #{tpu_custom_call.1} parent=1 // pred_check
      _
    $region3: #{tpu_custom_call.1} parent=1 // pred_check_branch
      %9 = sbr.rel (0) target = $region5
    $region4: #{tpu_custom_call.1} parent=1 // pred_region
      _
    $region5: #{tpu_custom_call.1} parent=1 // pred_fallthru
      _
    // Predicated region
    $region6: #{tpu_custom_call.1} parent=1 // pred_check
      _
    $region7: #{tpu_custom_call.1} parent=1 // pred_check_branch
      %11 = sbr.rel (0) target = $region9
    $region8: #{tpu_custom_call.1} parent=1 // pred_region
      _
    $region9: #{tpu_custom_call.1} parent=1 // pred_fallthru
      _
    %v12 = vld [vmem:[%s0] sm:$0x7]
    %v13 = vld [vmem:[%s1] sm:$0xff]
    %v14 = vld [vmem:[%s1 + $0x8] sm:$0xff]
    %v15 = vld [vmem:[%s1 + $0x10] sm:$0xff]
    %v16 = vld [vmem:[%s1 + $0x18] sm:$0xff]
    %v17 = vld [vmem:[%s1 + $0x20] sm:$0xff]
    %v18 = vld [vmem:[%s1 + $0x28] sm:$0xff]
    %v19 = vld [vmem:[%s1 + $0x30] sm:$0xff]
    %v20 = vld [vmem:[%s1 + $0x38] sm:$0xff]
    %v21 = vld [vmem:[%s1 + $0x40] sm:$0xff]
    %v22 = vld [vmem:[%s1 + $0x48] sm:$0xff]
    %v23 = vld [vmem:[%s1 + $0x50] sm:$0xff]
    %v24 = vld [vmem:[%s1 + $0x58] sm:$0xff]
    %v25 = vld [vmem:[%s1 + $0x60] sm:$0xff]
    %v26 = vld [vmem:[%s1 + $0x68] sm:$0xff]
    %v27 = vld [vmem:[%s1 + $0x70] sm:$0xff]
    %v28 = vld [vmem:[%s1 + $0x78] sm:$0xff]
    %v29 = vlaneseq
    %v30 = vshrl.u32 %v29, 7
    %v31 = vadd.s32 %v30, 8
    %v32 = vadd.s32 %v30, 16
    %v33 = vadd.s32 %v30, 24
    %v34 = vadd.s32 %v30, 32
    %v35 = vadd.s32 %v30, 40
    %v36 = vperm.slane %v12, 0
    %vm37 = vcmp.eq.s32.totalorder %v30, %v36
    %vm38 = vcmp.eq.s32.totalorder %v31, %v36
    %vm39 = vcmp.eq.s32.totalorder %v32, %v36
    %vm40 = vcmp.eq.s32.totalorder %v33, %v36
    %vm41 = vcmp.eq.s32.totalorder %v34, %v36
    %vm42 = vcmp.eq.s32.totalorder %v35, %v36
    %v43 = vsel %vm37, 1, 0
    %v44 = vsel %vm38, 1, 0
    %v45 = vsel %vm39, 1, 0
    %v46 = vsel %vm40, 1, 0
    %v47 = vsel %vm41, 1, 0
    %v48 = vsel %vm42, 1, 0
    %v49 = vcvt.s32.f32 %v43
    %v50 = vcvt.s32.f32 %v44
    %v51 = vcvt.s32.f32 %v45
    %v52 = vcvt.s32.f32 %v46
    %v53 = vcvt.s32.f32 %v47
    %v54 = vcvt.s32.f32 %v48
    %v55 = vperm.slane %v12, 1
    %vm56 = vcmp.eq.s32.totalorder %v30, %v55
    %vm57 = vcmp.eq.s32.totalorder %v31, %v55
    %vm58 = vcmp.eq.s32.totalorder %v32, %v55
    %vm59 = vcmp.eq.s32.totalorder %v33, %v55
    %vm60 = vcmp.eq.s32.totalorder %v34, %v55
    %vm61 = vcmp.eq.s32.totalorder %v35, %v55
    %v62 = vsel %vm56, 1, 0
    %v63 = vsel %vm57, 1, 0
    %v64 = vsel %vm58, 1, 0
    %v65 = vsel %vm59, 1, 0
    %v66 = vsel %vm60, 1, 0
    %v67 = vsel %vm61, 1, 0
    %v68 = vcvt.s32.f32 %v62
    %v69 = vcvt.s32.f32 %v63
    %v70 = vcvt.s32.f32 %v64
    %v71 = vcvt.s32.f32 %v65
    %v72 = vcvt.s32.f32 %v66
    %v73 = vcvt.s32.f32 %v67
    %v74 = vsub.f32 %v68, %v49
    %v75 = vsub.f32 %v69, %v50
    %v76 = vsub.f32 %v70, %v51
    %v77 = vsub.f32 %v71, %v52
    %v78 = vsub.f32 %v72, %v53
    %v79 = vsub.f32 %v73, %v54
    %v80 = vperm.slane %v12, 2
    %vm81 = vcmp.eq.s32.totalorder %v30, %v80
    %vm82 = vcmp.eq.s32.totalorder %v31, %v80
    %vm83 = vcmp.eq.s32.totalorder %v32, %v80
    %vm84 = vcmp.eq.s32.totalorder %v33, %v80
    %vm85 = vcmp.eq.s32.totalorder %v34, %v80
    %vm86 = vcmp.eq.s32.totalorder %v35, %v80
    %v87 = vsel %vm81, 1, 0
    %v88 = vsel %vm82, 1, 0
    %v89 = vsel %vm83, 1, 0
    %v90 = vsel %vm84, 1, 0
    %v91 = vsel %vm85, 1, 0
    %v92 = vsel %vm86, 1, 0
    %v93 = vcvt.s32.f32 %v87
    %v94 = vcvt.s32.f32 %v88
    %v95 = vcvt.s32.f32 %v89
    %v96 = vcvt.s32.f32 %v90
    %v97 = vcvt.s32.f32 %v91
    %v98 = vcvt.s32.f32 %v92
    %v99 = vsub.f32 %v93, %v49
    %v100 = vsub.f32 %v94, %v50
    %v101 = vsub.f32 %v95, %v51
    %v102 = vsub.f32 %v96, %v52
    %v103 = vsub.f32 %v97, %v53
    %v104 = vsub.f32 %v98, %v54
    %vm105 = vcmask 392192
    %v107 = vsel %vm105, %v13, 0
    %v110 = vsel %vm105, %v14, 0
    %v113 = vsel %vm105, %v15, 0
    %v116 = vsel %vm105, %v16, 0
    %v119 = vsel %vm105, %v17, 0
    %v122 = vsel %vm105, %v18, 0
    %v125 = vsel %vm105, %v19, 0
    %v128 = vsel %vm105, %v20, 0
    %v131 = vsel %vm105, %v21, 0
    %v134 = vsel %vm105, %v22, 0
    %v137 = vsel %vm105, %v23, 0
    %v140 = vsel %vm105, %v24, 0
    %v143 = vsel %vm105, %v25, 0
    %v146 = vsel %vm105, %v26, 0
    %v149 = vsel %vm105, %v27, 0
    %v152 = vsel %vm105, %v28, 0
    %154 = vmatpush.msra.mxu0 0.0
    %155 = vmatpush.msra.mxu0 0.0
    %156 = vmatpush.msra.mxu0 0.0
    %157 = vmatpush.msra.mxu0 0.0
    %158 = vmatpush.msra.mxu0 0.0
    %159 = vmatpush.msra.mxu0 0.0
    %160 = vmatpush.msra.mxu0 0.0
    %161 = vmatpush.msra.mxu0 0.0
    %162 = vmatpush.msra.mxu0 0.0
    %163 = vmatpush.msra.mxu0 0.0
    %v164 = vand.u32 %v79, 4294901760
    %165 = vmatpush.msra.mxu0 %v164
    %v166 = vand.u32 %v78, 4294901760
    %167 = vmatpush.msra.mxu0 %v166
    %v168 = vand.u32 %v77, 4294901760
    %169 = vmatpush.msra.mxu0 %v168
    %v170 = vand.u32 %v76, 4294901760
    %171 = vmatpush.msra.mxu0 %v170
    %v172 = vand.u32 %v75, 4294901760
    %173 = vmatpush.msra.mxu0 %v172
    %v174 = vand.u32 %v74, 4294901760
    %175 = vmatpush.msra.mxu0 %v174
    %v176 = vand.u32 %v107, 4294901760
    %v177 = vsub.f32 %v107, %v176
    %v178 = vand.u32 %v177, 4294901760
    %v179 = vsub.f32 %v177, %v178
    %v180 = vand.u32 %v179, 4294901760
    %181 = vmatmul.f32.gmra.mxu0 %v180
    %v182 = vpop.f32.mrf.mxu0
    %v183 = vadd.f32 0.0, %v182
    %v184 = vand.u32 %v110, 4294901760
    %v185 = vsub.f32 %v110, %v184
    %v186 = vand.u32 %v185, 4294901760
    %v187 = vsub.f32 %v185, %v186
    %v188 = vand.u32 %v187, 4294901760
    %189 = vmatmul.f32.gmra.mxu0 %v188
    %v190 = vpop.f32.mrf.mxu0
    %v191 = vadd.f32 0.0, %v190
    %v192 = vand.u32 %v113, 4294901760
    %v193 = vsub.f32 %v113, %v192
    %v194 = vand.u32 %v193, 4294901760
    %v195 = vsub.f32 %v193, %v194
    %v196 = vand.u32 %v195, 4294901760
    %197 = vmatmul.f32.gmra.mxu0 %v196
    %v198 = vpop.f32.mrf.mxu0
    %v199 = vadd.f32 0.0, %v198
    %v200 = vand.u32 %v116, 4294901760
    %v201 = vsub.f32 %v116, %v200
    %v202 = vand.u32 %v201, 4294901760
    %v203 = vsub.f32 %v201, %v202
    %v204 = vand.u32 %v203, 4294901760
    %205 = vmatmul.f32.gmra.mxu0 %v204
    %v206 = vpop.f32.mrf.mxu0
    %v207 = vadd.f32 0.0, %v206
    %v208 = vand.u32 %v119, 4294901760
    %v209 = vsub.f32 %v119, %v208
    %v210 = vand.u32 %v209, 4294901760
    %v211 = vsub.f32 %v209, %v210
    %v212 = vand.u32 %v211, 4294901760
    %213 = vmatmul.f32.gmra.mxu0 %v212
    %v214 = vpop.f32.mrf.mxu0
    %v215 = vadd.f32 0.0, %v214
    %v216 = vand.u32 %v122, 4294901760
    %v217 = vsub.f32 %v122, %v216
    %v218 = vand.u32 %v217, 4294901760
    %v219 = vsub.f32 %v217, %v218
    %v220 = vand.u32 %v219, 4294901760
    %221 = vmatmul.f32.gmra.mxu0 %v220
    %v222 = vpop.f32.mrf.mxu0
    %v223 = vadd.f32 0.0, %v222
    %v224 = vand.u32 %v125, 4294901760
    %v225 = vsub.f32 %v125, %v224
    %v226 = vand.u32 %v225, 4294901760
    %v227 = vsub.f32 %v225, %v226
    %v228 = vand.u32 %v227, 4294901760
    %229 = vmatmul.f32.gmra.mxu0 %v228
    %v230 = vpop.f32.mrf.mxu0
    %v231 = vadd.f32 0.0, %v230
    %v232 = vand.u32 %v128, 4294901760
    %v233 = vsub.f32 %v128, %v232
    %v234 = vand.u32 %v233, 4294901760
    %v235 = vsub.f32 %v233, %v234
    %v236 = vand.u32 %v235, 4294901760
    %237 = vmatmul.f32.gmra.mxu0 %v236
    %v238 = vpop.f32.mrf.mxu0
    %v239 = vadd.f32 0.0, %v238
    %v240 = vand.u32 %v131, 4294901760
    %v241 = vsub.f32 %v131, %v240
    %v242 = vand.u32 %v241, 4294901760
    %v243 = vsub.f32 %v241, %v242
    %v244 = vand.u32 %v243, 4294901760
    %245 = vmatmul.f32.gmra.mxu0 %v244
    %v246 = vpop.f32.mrf.mxu0
    %v247 = vadd.f32 0.0, %v246
    %v248 = vand.u32 %v134, 4294901760
    %v249 = vsub.f32 %v134, %v248
    %v250 = vand.u32 %v249, 4294901760
    %v251 = vsub.f32 %v249, %v250
    %v252 = vand.u32 %v251, 4294901760
    %253 = vmatmul.f32.gmra.mxu0 %v252
    %v254 = vpop.f32.mrf.mxu0
    %v255 = vadd.f32 0.0, %v254
    %v256 = vand.u32 %v137, 4294901760
    %v257 = vsub.f32 %v137, %v256
    %v258 = vand.u32 %v257, 4294901760
    %v259 = vsub.f32 %v257, %v258
    %v260 = vand.u32 %v259, 4294901760
    %261 = vmatmul.f32.gmra.mxu0 %v260
    %v262 = vpop.f32.mrf.mxu0
    %v263 = vadd.f32 0.0, %v262
    %v264 = vand.u32 %v140, 4294901760
    %v265 = vsub.f32 %v140, %v264
    %v266 = vand.u32 %v265, 4294901760
    %v267 = vsub.f32 %v265, %v266
    %v268 = vand.u32 %v267, 4294901760
    %269 = vmatmul.f32.gmra.mxu0 %v268
    %v270 = vpop.f32.mrf.mxu0
    %v271 = vadd.f32 0.0, %v270
    %v272 = vand.u32 %v143, 4294901760
    %v273 = vsub.f32 %v143, %v272
    %v274 = vand.u32 %v273, 4294901760
    %v275 = vsub.f32 %v273, %v274
    %v276 = vand.u32 %v275, 4294901760
    %277 = vmatmul.f32.gmra.mxu0 %v276
    %v278 = vpop.f32.mrf.mxu0
    %v279 = vadd.f32 0.0, %v278
    %v280 = vand.u32 %v146, 4294901760
    %v281 = vsub.f32 %v146, %v280
    %v282 = vand.u32 %v281, 4294901760
    %v283 = vsub.f32 %v281, %v282
    %v284 = vand.u32 %v283, 4294901760
    %285 = vmatmul.f32.gmra.mxu0 %v284
    %v286 = vpop.f32.mrf.mxu0
    %v287 = vadd.f32 0.0, %v286
    %v288 = vand.u32 %v149, 4294901760
    %v289 = vsub.f32 %v149, %v288
    %v290 = vand.u32 %v289, 4294901760
    %v291 = vsub.f32 %v289, %v290
    %v292 = vand.u32 %v291, 4294901760
    %293 = vmatmul.f32.gmra.mxu0 %v292
    %v294 = vpop.f32.mrf.mxu0
    %v295 = vadd.f32 0.0, %v294
    %v296 = vand.u32 %v152, 4294901760
    %v297 = vsub.f32 %v152, %v296
    %v298 = vand.u32 %v297, 4294901760
    %v299 = vsub.f32 %v297, %v298
    %v300 = vand.u32 %v299, 4294901760
    %301 = vmatmul.f32.gmra.mxu0 %v300
    %v302 = vpop.f32.mrf.mxu0
    %v303 = vadd.f32 0.0, %v302
    %304 = vdwg.mxu0
    %305 = vmatpush.msra.mxu0 0.0
    %306 = vmatpush.msra.mxu0 0.0
    %307 = vmatpush.msra.mxu0 0.0
    %308 = vmatpush.msra.mxu0 0.0
    %309 = vmatpush.msra.mxu0 0.0
    %310 = vmatpush.msra.mxu0 0.0
    %311 = vmatpush.msra.mxu0 0.0
    %312 = vmatpush.msra.mxu0 0.0
    %313 = vmatpush.msra.mxu0 0.0
    %314 = vmatpush.msra.mxu0 0.0
    %v315 = vand.u32 %v79, 4294901760
    %v316 = vsub.f32 %v79, %v315
    %v317 = vand.u32 %v316, 4294901760
    %v318 = vsub.f32 %v316, %v317
    %v319 = vand.u32 %v318, 4294901760
    %320 = vmatpush.msra.mxu0 %v319
    %v321 = vand.u32 %v78, 4294901760
    %v322 = vsub.f32 %v78, %v321
    %v323 = vand.u32 %v322, 4294901760
    %v324 = vsub.f32 %v322, %v323
    %v325 = vand.u32 %v324, 4294901760
    %326 = vmatpush.msra.mxu0 %v325
    %v327 = vand.u32 %v77, 4294901760
    %v328 = vsub.f32 %v77, %v327
    %v329 = vand.u32 %v328, 4294901760
    %v330 = vsub.f32 %v328, %v329
    %v331 = vand.u32 %v330, 4294901760
    %332 = vmatpush.msra.mxu0 %v331
    %v333 = vand.u32 %v76, 4294901760
    %v334 = vsub.f32 %v76, %v333
    %v335 = vand.u32 %v334, 4294901760
    %v336 = vsub.f32 %v334, %v335
    %v337 = vand.u32 %v336, 4294901760
    %338 = vmatpush.msra.mxu0 %v337
    %v339 = vand.u32 %v75, 4294901760
    %v340 = vsub.f32 %v75, %v339
    %v341 = vand.u32 %v340, 4294901760
    %v342 = vsub.f32 %v340, %v341
    %v343 = vand.u32 %v342, 4294901760
    %344 = vmatpush.msra.mxu0 %v343
    %v345 = vand.u32 %v74, 4294901760
    %v346 = vsub.f32 %v74, %v345
    %v347 = vand.u32 %v346, 4294901760
    %v348 = vsub.f32 %v346, %v347
    %v349 = vand.u32 %v348, 4294901760
    %350 = vmatpush.msra.mxu0 %v349
    %v351 = vand.u32 %v107, 4294901760
    %352 = vmatmul.f32.gmra.mxu0 %v351
    %v353 = vpop.f32.mrf.mxu0
    %v354 = vadd.f32 %v183, %v353
    %v355 = vand.u32 %v110, 4294901760
    %356 = vmatmul.f32.gmra.mxu0 %v355
    %v357 = vpop.f32.mrf.mxu0
    %v358 = vadd.f32 %v191, %v357
    %v359 = vand.u32 %v113, 4294901760
    %360 = vmatmul.f32.gmra.mxu0 %v359
    %v361 = vpop.f32.mrf.mxu0
    %v362 = vadd.f32 %v199, %v361
    %v363 = vand.u32 %v116, 4294901760
    %364 = vmatmul.f32.gmra.mxu0 %v363
    %v365 = vpop.f32.mrf.mxu0
    %v366 = vadd.f32 %v207, %v365
    %v367 = vand.u32 %v119, 4294901760
    %368 = vmatmul.f32.gmra.mxu0 %v367
    %v369 = vpop.f32.mrf.mxu0
    %v370 = vadd.f32 %v215, %v369
    %v371 = vand.u32 %v122, 4294901760
    %372 = vmatmul.f32.gmra.mxu0 %v371
    %v373 = vpop.f32.mrf.mxu0
    %v374 = vadd.f32 %v223, %v373
    %v375 = vand.u32 %v125, 4294901760
    %376 = vmatmul.f32.gmra.mxu0 %v375
    %v377 = vpop.f32.mrf.mxu0
    %v378 = vadd.f32 %v231, %v377
    %v379 = vand.u32 %v128, 4294901760
    %380 = vmatmul.f32.gmra.mxu0 %v379
    %v381 = vpop.f32.mrf.mxu0
    %v382 = vadd.f32 %v239, %v381
    %v383 = vand.u32 %v131, 4294901760
    %384 = vmatmul.f32.gmra.mxu0 %v383
    %v385 = vpop.f32.mrf.mxu0
    %v386 = vadd.f32 %v247, %v385
    %v387 = vand.u32 %v134, 4294901760
    %388 = vmatmul.f32.gmra.mxu0 %v387
    %v389 = vpop.f32.mrf.mxu0
    %v390 = vadd.f32 %v255, %v389
    %v391 = vand.u32 %v137, 4294901760
    %392 = vmatmul.f32.gmra.mxu0 %v391
    %v393 = vpop.f32.mrf.mxu0
    %v394 = vadd.f32 %v263, %v393
    %v395 = vand.u32 %v140, 4294901760
    %396 = vmatmul.f32.gmra.mxu0 %v395
    %v397 = vpop.f32.mrf.mxu0
    %v398 = vadd.f32 %v271, %v397
    %v399 = vand.u32 %v143, 4294901760
    %400 = vmatmul.f32.gmra.mxu0 %v399
    %v401 = vpop.f32.mrf.mxu0
    %v402 = vadd.f32 %v279, %v401
    %v403 = vand.u32 %v146, 4294901760
    %404 = vmatmul.f32.gmra.mxu0 %v403
    %v405 = vpop.f32.mrf.mxu0
    %v406 = vadd.f32 %v287, %v405
    %v407 = vand.u32 %v149, 4294901760
    %408 = vmatmul.f32.gmra.mxu0 %v407
    %v409 = vpop.f32.mrf.mxu0
    %v410 = vadd.f32 %v295, %v409
    %v411 = vand.u32 %v152, 4294901760
    %412 = vmatmul.f32.gmra.mxu0 %v411
    %v413 = vpop.f32.mrf.mxu0
    %v414 = vadd.f32 %v303, %v413
    %415 = vdwg.mxu0
    %416 = vmatpush.msra.mxu0 0.0
    %417 = vmatpush.msra.mxu0 0.0
    %418 = vmatpush.msra.mxu0 0.0
    %419 = vmatpush.msra.mxu0 0.0
    %420 = vmatpush.msra.mxu0 0.0
    %421 = vmatpush.msra.mxu0 0.0
    %422 = vmatpush.msra.mxu0 0.0
    %423 = vmatpush.msra.mxu0 0.0
    %424 = vmatpush.msra.mxu0 0.0
    %425 = vmatpush.msra.mxu0 0.0
    %v426 = vand.u32 %v79, 4294901760
    %v427 = vsub.f32 %v79, %v426
    %428 = vmatpush.msra.mxu0 %v427
    %v429 = vand.u32 %v78, 4294901760
    %v430 = vsub.f32 %v78, %v429
    %431 = vmatpush.msra.mxu0 %v430
    %v432 = vand.u32 %v77, 4294901760
    %v433 = vsub.f32 %v77, %v432
    %434 = vmatpush.msra.mxu0 %v433
    %v435 = vand.u32 %v76, 4294901760
    %v436 = vsub.f32 %v76, %v435
    %437 = vmatpush.msra.mxu0 %v436
    %v438 = vand.u32 %v75, 4294901760
    %v439 = vsub.f32 %v75, %v438
    %440 = vmatpush.msra.mxu0 %v439
    %v441 = vand.u32 %v74, 4294901760
    %v442 = vsub.f32 %v74, %v441
    %443 = vmatpush.msra.mxu0 %v442
    %v444 = vand.u32 %v107, 4294901760
    %v445 = vsub.f32 %v107, %v444
    %446 = vmatmul.f32.gmra.mxu0 %v445
    %v447 = vpop.f32.mrf.mxu0
    %v448 = vadd.f32 %v354, %v447
    %v449 = vand.u32 %v110, 4294901760
    %v450 = vsub.f32 %v110, %v449
    %451 = vmatmul.f32.gmra.mxu0 %v450
    %v452 = vpop.f32.mrf.mxu0
    %v453 = vadd.f32 %v358, %v452
    %v454 = vand.u32 %v113, 4294901760
    %v455 = vsub.f32 %v113, %v454
    %456 = vmatmul.f32.gmra.mxu0 %v455
    %v457 = vpop.f32.mrf.mxu0
    %v458 = vadd.f32 %v362, %v457
    %v459 = vand.u32 %v116, 4294901760
    %v460 = vsub.f32 %v116, %v459
    %461 = vmatmul.f32.gmra.mxu0 %v460
    %v462 = vpop.f32.mrf.mxu0
    %v463 = vadd.f32 %v366, %v462
    %v464 = vand.u32 %v119, 4294901760
    %v465 = vsub.f32 %v119, %v464
    %466 = vmatmul.f32.gmra.mxu0 %v465
    %v467 = vpop.f32.mrf.mxu0
    %v468 = vadd.f32 %v370, %v467
    %v469 = vand.u32 %v122, 4294901760
    %v470 = vsub.f32 %v122, %v469
    %471 = vmatmul.f32.gmra.mxu0 %v470
    %v472 = vpop.f32.mrf.mxu0
    %v473 = vadd.f32 %v374, %v472
    %v474 = vand.u32 %v125, 4294901760
    %v475 = vsub.f32 %v125, %v474
    %476 = vmatmul.f32.gmra.mxu0 %v475
    %v477 = vpop.f32.mrf.mxu0
    %v478 = vadd.f32 %v378, %v477
    %v479 = vand.u32 %v128, 4294901760
    %v480 = vsub.f32 %v128, %v479
    %481 = vmatmul.f32.gmra.mxu0 %v480
    %v482 = vpop.f32.mrf.mxu0
    %v483 = vadd.f32 %v382, %v482
    %v484 = vand.u32 %v131, 4294901760
    %v485 = vsub.f32 %v131, %v484
    %486 = vmatmul.f32.gmra.mxu0 %v485
    %v487 = vpop.f32.mrf.mxu0
    %v488 = vadd.f32 %v386, %v487
    %v489 = vand.u32 %v134, 4294901760
    %v490 = vsub.f32 %v134, %v489
    %491 = vmatmul.f32.gmra.mxu0 %v490
    %v492 = vpop.f32.mrf.mxu0
    %v493 = vadd.f32 %v390, %v492
    %v494 = vand.u32 %v137, 4294901760
    %v495 = vsub.f32 %v137, %v494
    %496 = vmatmul.f32.gmra.mxu0 %v495
    %v497 = vpop.f32.mrf.mxu0
    %v498 = vadd.f32 %v394, %v497
    %v499 = vand.u32 %v140, 4294901760
    %v500 = vsub.f32 %v140, %v499
    %501 = vmatmul.f32.gmra.mxu0 %v500
    %v502 = vpop.f32.mrf.mxu0
    %v503 = vadd.f32 %v398, %v502
    %v504 = vand.u32 %v143, 4294901760
    %v505 = vsub.f32 %v143, %v504
    %506 = vmatmul.f32.gmra.mxu0 %v505
    %v507 = vpop.f32.mrf.mxu0
    %v508 = vadd.f32 %v402, %v507
    %v509 = vand.u32 %v146, 4294901760
    %v510 = vsub.f32 %v146, %v509
    %511 = vmatmul.f32.gmra.mxu0 %v510
    %v512 = vpop.f32.mrf.mxu0
    %v513 = vadd.f32 %v406, %v512
    %v514 = vand.u32 %v149, 4294901760
    %v515 = vsub.f32 %v149, %v514
    %516 = vmatmul.f32.gmra.mxu0 %v515
    %v517 = vpop.f32.mrf.mxu0
    %v518 = vadd.f32 %v410, %v517
    %v519 = vand.u32 %v152, 4294901760
    %v520 = vsub.f32 %v152, %v519
    %521 = vmatmul.f32.gmra.mxu0 %v520
    %v522 = vpop.f32.mrf.mxu0
    %v523 = vadd.f32 %v414, %v522
    %524 = vdwg.mxu0
    %525 = vmatpush.msra.mxu0 0.0
    %526 = vmatpush.msra.mxu0 0.0
    %527 = vmatpush.msra.mxu0 0.0
    %528 = vmatpush.msra.mxu0 0.0
    %529 = vmatpush.msra.mxu0 0.0
    %530 = vmatpush.msra.mxu0 0.0
    %531 = vmatpush.msra.mxu0 0.0
    %532 = vmatpush.msra.mxu0 0.0
    %533 = vmatpush.msra.mxu0 0.0
    %534 = vmatpush.msra.mxu0 0.0
    %v535 = vand.u32 %v79, 4294901760
    %536 = vmatpush.msra.mxu0 %v535
    %v537 = vand.u32 %v78, 4294901760
    %538 = vmatpush.msra.mxu0 %v537
    %v539 = vand.u32 %v77, 4294901760
    %540 = vmatpush.msra.mxu0 %v539
    %v541 = vand.u32 %v76, 4294901760
    %542 = vmatpush.msra.mxu0 %v541
    %v543 = vand.u32 %v75, 4294901760
    %544 = vmatpush.msra.mxu0 %v543
    %v545 = vand.u32 %v74, 4294901760
    %546 = vmatpush.msra.mxu0 %v545
    %v547 = vand.u32 %v107, 4294901760
    %v548 = vsub.f32 %v107, %v547
    %v549 = vand.u32 %v548, 4294901760
    %550 = vmatmul.f32.gmra.mxu0 %v549
    %v551 = vpop.f32.mrf.mxu0
    %v552 = vadd.f32 %v448, %v551
    %v553 = vand.u32 %v110, 4294901760
    %v554 = vsub.f32 %v110, %v553
    %v555 = vand.u32 %v554, 4294901760
    %556 = vmatmul.f32.gmra.mxu0 %v555
    %v557 = vpop.f32.mrf.mxu0
    %v558 = vadd.f32 %v453, %v557
    %v559 = vand.u32 %v113, 4294901760
    %v560 = vsub.f32 %v113, %v559
    %v561 = vand.u32 %v560, 4294901760
    %562 = vmatmul.f32.gmra.mxu0 %v561
    %v563 = vpop.f32.mrf.mxu0
    %v564 = vadd.f32 %v458, %v563
    %v565 = vand.u32 %v116, 4294901760
    %v566 = vsub.f32 %v116, %v565
    %v567 = vand.u32 %v566, 4294901760
    %568 = vmatmul.f32.gmra.mxu0 %v567
    %v569 = vpop.f32.mrf.mxu0
    %v570 = vadd.f32 %v463, %v569
    %v571 = vand.u32 %v119, 4294901760
    %v572 = vsub.f32 %v119, %v571
    %v573 = vand.u32 %v572, 4294901760
    %574 = vmatmul.f32.gmra.mxu0 %v573
    %v575 = vpop.f32.mrf.mxu0
    %v576 = vadd.f32 %v468, %v575
    %v577 = vand.u32 %v122, 4294901760
    %v578 = vsub.f32 %v122, %v577
    %v579 = vand.u32 %v578, 4294901760
    %580 = vmatmul.f32.gmra.mxu0 %v579
    %v581 = vpop.f32.mrf.mxu0
    %v582 = vadd.f32 %v473, %v581
    %v583 = vand.u32 %v125, 4294901760
    %v584 = vsub.f32 %v125, %v583
    %v585 = vand.u32 %v584, 4294901760
    %586 = vmatmul.f32.gmra.mxu0 %v585
    %v587 = vpop.f32.mrf.mxu0
    %v588 = vadd.f32 %v478, %v587
    %v589 = vand.u32 %v128, 4294901760
    %v590 = vsub.f32 %v128, %v589
    %v591 = vand.u32 %v590, 4294901760
    %592 = vmatmul.f32.gmra.mxu0 %v591
    %v593 = vpop.f32.mrf.mxu0
    %v594 = vadd.f32 %v483, %v593
    %v595 = vand.u32 %v131, 4294901760
    %v596 = vsub.f32 %v131, %v595
    %v597 = vand.u32 %v596, 4294901760
    %598 = vmatmul.f32.gmra.mxu0 %v597
    %v599 = vpop.f32.mrf.mxu0
    %v600 = vadd.f32 %v488, %v599
    %v601 = vand.u32 %v134, 4294901760
    %v602 = vsub.f32 %v134, %v601
    %v603 = vand.u32 %v602, 4294901760
    %604 = vmatmul.f32.gmra.mxu0 %v603
    %v605 = vpop.f32.mrf.mxu0
    %v606 = vadd.f32 %v493, %v605
    %v607 = vand.u32 %v137, 4294901760
    %v608 = vsub.f32 %v137, %v607
    %v609 = vand.u32 %v608, 4294901760
    %610 = vmatmul.f32.gmra.mxu0 %v609
    %v611 = vpop.f32.mrf.mxu0
    %v612 = vadd.f32 %v498, %v611
    %v613 = vand.u32 %v140, 4294901760
    %v614 = vsub.f32 %v140, %v613
    %v615 = vand.u32 %v614, 4294901760
    %616 = vmatmul.f32.gmra.mxu0 %v615
    %v617 = vpop.f32.mrf.mxu0
    %v618 = vadd.f32 %v503, %v617
    %v619 = vand.u32 %v143, 4294901760
    %v620 = vsub.f32 %v143, %v619
    %v621 = vand.u32 %v620, 4294901760
    %622 = vmatmul.f32.gmra.mxu0 %v621
    %v623 = vpop.f32.mrf.mxu0
    %v624 = vadd.f32 %v508, %v623
    %v625 = vand.u32 %v146, 4294901760
    %v626 = vsub.f32 %v146, %v625
    %v627 = vand.u32 %v626, 4294901760
    %628 = vmatmul.f32.gmra.mxu0 %v627
    %v629 = vpop.f32.mrf.mxu0
    %v630 = vadd.f32 %v513, %v629
    %v631 = vand.u32 %v149, 4294901760
    %v632 = vsub.f32 %v149, %v631
    %v633 = vand.u32 %v632, 4294901760
    %634 = vmatmul.f32.gmra.mxu0 %v633
    %v635 = vpop.f32.mrf.mxu0
    %v636 = vadd.f32 %v518, %v635
    %v637 = vand.u32 %v152, 4294901760
    %v638 = vsub.f32 %v152, %v637
    %v639 = vand.u32 %v638, 4294901760
    %640 = vmatmul.f32.gmra.mxu0 %v639
    %v641 = vpop.f32.mrf.mxu0
    %v642 = vadd.f32 %v523, %v641
    %643 = vdwg.mxu0
    %644 = vmatpush.msra.mxu0 0.0
    %645 = vmatpush.msra.mxu0 0.0
    %646 = vmatpush.msra.mxu0 0.0
    %647 = vmatpush.msra.mxu0 0.0
    %648 = vmatpush.msra.mxu0 0.0
    %649 = vmatpush.msra.mxu0 0.0
    %650 = vmatpush.msra.mxu0 0.0
    %651 = vmatpush.msra.mxu0 0.0
    %652 = vmatpush.msra.mxu0 0.0
    %653 = vmatpush.msra.mxu0 0.0
    %v654 = vand.u32 %v79, 4294901760
    %v655 = vsub.f32 %v79, %v654
    %v656 = vand.u32 %v655, 4294901760
    %657 = vmatpush.msra.mxu0 %v656
    %v658 = vand.u32 %v78, 4294901760
    %v659 = vsub.f32 %v78, %v658
    %v660 = vand.u32 %v659, 4294901760
    %661 = vmatpush.msra.mxu0 %v660
    %v662 = vand.u32 %v77, 4294901760
    %v663 = vsub.f32 %v77, %v662
    %v664 = vand.u32 %v663, 4294901760
    %665 = vmatpush.msra.mxu0 %v664
    %v666 = vand.u32 %v76, 4294901760
    %v667 = vsub.f32 %v76, %v666
    %v668 = vand.u32 %v667, 4294901760
    %669 = vmatpush.msra.mxu0 %v668
    %v670 = vand.u32 %v75, 4294901760
    %v671 = vsub.f32 %v75, %v670
    %v672 = vand.u32 %v671, 4294901760
    %673 = vmatpush.msra.mxu0 %v672
    %v674 = vand.u32 %v74, 4294901760
    %v675 = vsub.f32 %v74, %v674
    %v676 = vand.u32 %v675, 4294901760
    %677 = vmatpush.msra.mxu0 %v676
    %v678 = vand.u32 %v107, 4294901760
    %679 = vmatmul.f32.gmra.mxu0 %v678
    %v680 = vpop.f32.mrf.mxu0
    %v681 = vadd.f32 %v552, %v680
    %v682 = vand.u32 %v110, 4294901760
    %683 = vmatmul.f32.gmra.mxu0 %v682
    %v684 = vpop.f32.mrf.mxu0
    %v685 = vadd.f32 %v558, %v684
    %v686 = vand.u32 %v113, 4294901760
    %687 = vmatmul.f32.gmra.mxu0 %v686
    %v688 = vpop.f32.mrf.mxu0
    %v689 = vadd.f32 %v564, %v688
    %v690 = vand.u32 %v116, 4294901760
    %691 = vmatmul.f32.gmra.mxu0 %v690
    %v692 = vpop.f32.mrf.mxu0
    %v693 = vadd.f32 %v570, %v692
    %v694 = vand.u32 %v119, 4294901760
    %695 = vmatmul.f32.gmra.mxu0 %v694
    %v696 = vpop.f32.mrf.mxu0
    %v697 = vadd.f32 %v576, %v696
    %v698 = vand.u32 %v122, 4294901760
    %699 = vmatmul.f32.gmra.mxu0 %v698
    %v700 = vpop.f32.mrf.mxu0
    %v701 = vadd.f32 %v582, %v700
    %v702 = vand.u32 %v125, 4294901760
    %703 = vmatmul.f32.gmra.mxu0 %v702
    %v704 = vpop.f32.mrf.mxu0
    %v705 = vadd.f32 %v588, %v704
    %v706 = vand.u32 %v128, 4294901760
    %707 = vmatmul.f32.gmra.mxu0 %v706
    %v708 = vpop.f32.mrf.mxu0
    %v709 = vadd.f32 %v594, %v708
    %v710 = vand.u32 %v131, 4294901760
    %711 = vmatmul.f32.gmra.mxu0 %v710
    %v712 = vpop.f32.mrf.mxu0
    %v713 = vadd.f32 %v600, %v712
    %v714 = vand.u32 %v134, 4294901760
    %715 = vmatmul.f32.gmra.mxu0 %v714
    %v716 = vpop.f32.mrf.mxu0
    %v717 = vadd.f32 %v606, %v716
    %v718 = vand.u32 %v137, 4294901760
    %719 = vmatmul.f32.gmra.mxu0 %v718
    %v720 = vpop.f32.mrf.mxu0
    %v721 = vadd.f32 %v612, %v720
    %v722 = vand.u32 %v140, 4294901760
    %723 = vmatmul.f32.gmra.mxu0 %v722
    %v724 = vpop.f32.mrf.mxu0
    %v725 = vadd.f32 %v618, %v724
    %v726 = vand.u32 %v143, 4294901760
    %727 = vmatmul.f32.gmra.mxu0 %v726
    %v728 = vpop.f32.mrf.mxu0
    %v729 = vadd.f32 %v624, %v728
    %v730 = vand.u32 %v146, 4294901760
    %731 = vmatmul.f32.gmra.mxu0 %v730
    %v732 = vpop.f32.mrf.mxu0
    %v733 = vadd.f32 %v630, %v732
    %v734 = vand.u32 %v149, 4294901760
    %735 = vmatmul.f32.gmra.mxu0 %v734
    %v736 = vpop.f32.mrf.mxu0
    %v737 = vadd.f32 %v636, %v736
    %v738 = vand.u32 %v152, 4294901760
    %739 = vmatmul.f32.gmra.mxu0 %v738
    %v740 = vpop.f32.mrf.mxu0
    %v741 = vadd.f32 %v642, %v740
    %742 = vdwg.mxu0
    %743 = vmatpush.msra.mxu0 0.0
    %744 = vmatpush.msra.mxu0 0.0
    %745 = vmatpush.msra.mxu0 0.0
    %746 = vmatpush.msra.mxu0 0.0
    %747 = vmatpush.msra.mxu0 0.0
    %748 = vmatpush.msra.mxu0 0.0
    %749 = vmatpush.msra.mxu0 0.0
    %750 = vmatpush.msra.mxu0 0.0
    %751 = vmatpush.msra.mxu0 0.0
    %752 = vmatpush.msra.mxu0 0.0
    %v753 = vand.u32 %v79, 4294901760
    %754 = vmatpush.msra.mxu0 %v753
    %v755 = vand.u32 %v78, 4294901760
    %756 = vmatpush.msra.mxu0 %v755
    %v757 = vand.u32 %v77, 4294901760
    %758 = vmatpush.msra.mxu0 %v757
    %v759 = vand.u32 %v76, 4294901760
    %760 = vmatpush.msra.mxu0 %v759
    %v761 = vand.u32 %v75, 4294901760
    %762 = vmatpush.msra.mxu0 %v761
    %v763 = vand.u32 %v74, 4294901760
    %764 = vmatpush.msra.mxu0 %v763
    %v765 = vand.u32 %v107, 4294901760
    %766 = vmatmul.f32.gmra.mxu0 %v765
    %v767 = vpop.f32.mrf.mxu0
    %v768 = vadd.f32 %v681, %v767
    %v769 = vand.u32 %v110, 4294901760
    %770 = vmatmul.f32.gmra.mxu0 %v769
    %v771 = vpop.f32.mrf.mxu0
    %v772 = vadd.f32 %v685, %v771
    %v773 = vand.u32 %v113, 4294901760
    %774 = vmatmul.f32.gmra.mxu0 %v773
    %v775 = vpop.f32.mrf.mxu0
    %v776 = vadd.f32 %v689, %v775
    %v777 = vand.u32 %v116, 4294901760
    %778 = vmatmul.f32.gmra.mxu0 %v777
    %v779 = vpop.f32.mrf.mxu0
    %v780 = vadd.f32 %v693, %v779
    %v781 = vand.u32 %v119, 4294901760
    %782 = vmatmul.f32.gmra.mxu0 %v781
    %v783 = vpop.f32.mrf.mxu0
    %v784 = vadd.f32 %v697, %v783
    %v785 = vand.u32 %v122, 4294901760
    %786 = vmatmul.f32.gmra.mxu0 %v785
    %v787 = vpop.f32.mrf.mxu0
    %v788 = vadd.f32 %v701, %v787
    %v789 = vand.u32 %v125, 4294901760
    %790 = vmatmul.f32.gmra.mxu0 %v789
    %v791 = vpop.f32.mrf.mxu0
    %v792 = vadd.f32 %v705, %v791
    %v793 = vand.u32 %v128, 4294901760
    %794 = vmatmul.f32.gmra.mxu0 %v793
    %v795 = vpop.f32.mrf.mxu0
    %v796 = vadd.f32 %v709, %v795
    %v797 = vand.u32 %v131, 4294901760
    %798 = vmatmul.f32.gmra.mxu0 %v797
    %v799 = vpop.f32.mrf.mxu0
    %v800 = vadd.f32 %v713, %v799
    %v801 = vand.u32 %v134, 4294901760
    %802 = vmatmul.f32.gmra.mxu0 %v801
    %v803 = vpop.f32.mrf.mxu0
    %v804 = vadd.f32 %v717, %v803
    %v805 = vand.u32 %v137, 4294901760
    %806 = vmatmul.f32.gmra.mxu0 %v805
    %v807 = vpop.f32.mrf.mxu0
    %v808 = vadd.f32 %v721, %v807
    %v809 = vand.u32 %v140, 4294901760
    %810 = vmatmul.f32.gmra.mxu0 %v809
    %v811 = vpop.f32.mrf.mxu0
    %v812 = vadd.f32 %v725, %v811
    %v813 = vand.u32 %v143, 4294901760
    %814 = vmatmul.f32.gmra.mxu0 %v813
    %v815 = vpop.f32.mrf.mxu0
    %v816 = vadd.f32 %v729, %v815
    %v817 = vand.u32 %v146, 4294901760
    %818 = vmatmul.f32.gmra.mxu0 %v817
    %v819 = vpop.f32.mrf.mxu0
    %v820 = vadd.f32 %v733, %v819
    %v821 = vand.u32 %v149, 4294901760
    %822 = vmatmul.f32.gmra.mxu0 %v821
    %v823 = vpop.f32.mrf.mxu0
    %v824 = vadd.f32 %v737, %v823
    %v825 = vand.u32 %v152, 4294901760
    %826 = vmatmul.f32.gmra.mxu0 %v825
    %v827 = vpop.f32.mrf.mxu0
    %v828 = vadd.f32 %v741, %v827
    %829 = vdwg.mxu0
    %830 = vmatpush.msra.mxu0 0.0
    %831 = vmatpush.msra.mxu0 0.0
    %832 = vmatpush.msra.mxu0 0.0
    %833 = vmatpush.msra.mxu0 0.0
    %834 = vmatpush.msra.mxu0 0.0
    %835 = vmatpush.msra.mxu0 0.0
    %836 = vmatpush.msra.mxu0 0.0
    %837 = vmatpush.msra.mxu0 0.0
    %838 = vmatpush.msra.mxu0 0.0
    %839 = vmatpush.msra.mxu0 0.0
    %v840 = vand.u32 %v104, 4294901760
    %841 = vmatpush.msra.mxu0 %v840
    %v842 = vand.u32 %v103, 4294901760
    %843 = vmatpush.msra.mxu0 %v842
    %v844 = vand.u32 %v102, 4294901760
    %845 = vmatpush.msra.mxu0 %v844
    %v846 = vand.u32 %v101, 4294901760
    %847 = vmatpush.msra.mxu0 %v846
    %v848 = vand.u32 %v100, 4294901760
    %849 = vmatpush.msra.mxu0 %v848
    %v850 = vand.u32 %v99, 4294901760
    %851 = vmatpush.msra.mxu0 %v850
    %v852 = vand.u32 %v107, 4294901760
    %v853 = vsub.f32 %v107, %v852
    %v854 = vand.u32 %v853, 4294901760
    %v855 = vsub.f32 %v853, %v854
    %v856 = vand.u32 %v855, 4294901760
    %857 = vmatmul.f32.gmra.mxu0 %v856
    %v858 = vpop.f32.mrf.mxu0
    %v859 = vadd.f32 0.0, %v858
    %v860 = vand.u32 %v110, 4294901760
    %v861 = vsub.f32 %v110, %v860
    %v862 = vand.u32 %v861, 4294901760
    %v863 = vsub.f32 %v861, %v862
    %v864 = vand.u32 %v863, 4294901760
    %865 = vmatmul.f32.gmra.mxu0 %v864
    %v866 = vpop.f32.mrf.mxu0
    %v867 = vadd.f32 0.0, %v866
    %v868 = vand.u32 %v113, 4294901760
    %v869 = vsub.f32 %v113, %v868
    %v870 = vand.u32 %v869, 4294901760
    %v871 = vsub.f32 %v869, %v870
    %v872 = vand.u32 %v871, 4294901760
    %873 = vmatmul.f32.gmra.mxu0 %v872
    %v874 = vpop.f32.mrf.mxu0
    %v875 = vadd.f32 0.0, %v874
    %v876 = vand.u32 %v116, 4294901760
    %v877 = vsub.f32 %v116, %v876
    %v878 = vand.u32 %v877, 4294901760
    %v879 = vsub.f32 %v877, %v878
    %v880 = vand.u32 %v879, 4294901760
    %881 = vmatmul.f32.gmra.mxu0 %v880
    %v882 = vpop.f32.mrf.mxu0
    %v883 = vadd.f32 0.0, %v882
    %v884 = vand.u32 %v119, 4294901760
    %v885 = vsub.f32 %v119, %v884
    %v886 = vand.u32 %v885, 4294901760
    %v887 = vsub.f32 %v885, %v886
    %v888 = vand.u32 %v887, 4294901760
    %889 = vmatmul.f32.gmra.mxu0 %v888
    %v890 = vpop.f32.mrf.mxu0
    %v891 = vadd.f32 0.0, %v890
    %v892 = vand.u32 %v122, 4294901760
    %v893 = vsub.f32 %v122, %v892
    %v894 = vand.u32 %v893, 4294901760
    %v895 = vsub.f32 %v893, %v894
    %v896 = vand.u32 %v895, 4294901760
    %897 = vmatmul.f32.gmra.mxu0 %v896
    %v898 = vpop.f32.mrf.mxu0
    %v899 = vadd.f32 0.0, %v898
    %v900 = vand.u32 %v125, 4294901760
    %v901 = vsub.f32 %v125, %v900
    %v902 = vand.u32 %v901, 4294901760
    %v903 = vsub.f32 %v901, %v902
    %v904 = vand.u32 %v903, 4294901760
    %905 = vmatmul.f32.gmra.mxu0 %v904
    %v906 = vpop.f32.mrf.mxu0
    %v907 = vadd.f32 0.0, %v906
    %v908 = vand.u32 %v128, 4294901760
    %v909 = vsub.f32 %v128, %v908
    %v910 = vand.u32 %v909, 4294901760
    %v911 = vsub.f32 %v909, %v910
    %v912 = vand.u32 %v911, 4294901760
    %913 = vmatmul.f32.gmra.mxu0 %v912
    %v914 = vpop.f32.mrf.mxu0
    %v915 = vadd.f32 0.0, %v914
    %v916 = vand.u32 %v131, 4294901760
    %v917 = vsub.f32 %v131, %v916
    %v918 = vand.u32 %v917, 4294901760
    %v919 = vsub.f32 %v917, %v918
    %v920 = vand.u32 %v919, 4294901760
    %921 = vmatmul.f32.gmra.mxu0 %v920
    %v922 = vpop.f32.mrf.mxu0
    %v923 = vadd.f32 0.0, %v922
    %v924 = vand.u32 %v134, 4294901760
    %v925 = vsub.f32 %v134, %v924
    %v926 = vand.u32 %v925, 4294901760
    %v927 = vsub.f32 %v925, %v926
    %v928 = vand.u32 %v927, 4294901760
    %929 = vmatmul.f32.gmra.mxu0 %v928
    %v930 = vpop.f32.mrf.mxu0
    %v931 = vadd.f32 0.0, %v930
    %v932 = vand.u32 %v137, 4294901760
    %v933 = vsub.f32 %v137, %v932
    %v934 = vand.u32 %v933, 4294901760
    %v935 = vsub.f32 %v933, %v934
    %v936 = vand.u32 %v935, 4294901760
    %937 = vmatmul.f32.gmra.mxu0 %v936
    %v938 = vpop.f32.mrf.mxu0
    %v939 = vadd.f32 0.0, %v938
    %v940 = vand.u32 %v140, 4294901760
    %v941 = vsub.f32 %v140, %v940
    %v942 = vand.u32 %v941, 4294901760
    %v943 = vsub.f32 %v941, %v942
    %v944 = vand.u32 %v943, 4294901760
    %945 = vmatmul.f32.gmra.mxu0 %v944
    %v946 = vpop.f32.mrf.mxu0
    %v947 = vadd.f32 0.0, %v946
    %v948 = vand.u32 %v143, 4294901760
    %v949 = vsub.f32 %v143, %v948
    %v950 = vand.u32 %v949, 4294901760
    %v951 = vsub.f32 %v949, %v950
    %v952 = vand.u32 %v951, 4294901760
    %953 = vmatmul.f32.gmra.mxu0 %v952
    %v954 = vpop.f32.mrf.mxu0
    %v955 = vadd.f32 0.0, %v954
    %v956 = vand.u32 %v146, 4294901760
    %v957 = vsub.f32 %v146, %v956
    %v958 = vand.u32 %v957, 4294901760
    %v959 = vsub.f32 %v957, %v958
    %v960 = vand.u32 %v959, 4294901760
    %961 = vmatmul.f32.gmra.mxu0 %v960
    %v962 = vpop.f32.mrf.mxu0
    %v963 = vadd.f32 0.0, %v962
    %v964 = vand.u32 %v149, 4294901760
    %v965 = vsub.f32 %v149, %v964
    %v966 = vand.u32 %v965, 4294901760
    %v967 = vsub.f32 %v965, %v966
    %v968 = vand.u32 %v967, 4294901760
    %969 = vmatmul.f32.gmra.mxu0 %v968
    %v970 = vpop.f32.mrf.mxu0
    %v971 = vadd.f32 0.0, %v970
    %v972 = vand.u32 %v152, 4294901760
    %v973 = vsub.f32 %v152, %v972
    %v974 = vand.u32 %v973, 4294901760
    %v975 = vsub.f32 %v973, %v974
    %v976 = vand.u32 %v975, 4294901760
    %977 = vmatmul.f32.gmra.mxu0 %v976
    %v978 = vpop.f32.mrf.mxu0
    %v979 = vadd.f32 0.0, %v978
    %980 = vdwg.mxu0
    %981 = vmatpush.msra.mxu0 0.0
    %982 = vmatpush.msra.mxu0 0.0
    %983 = vmatpush.msra.mxu0 0.0
    %984 = vmatpush.msra.mxu0 0.0
    %985 = vmatpush.msra.mxu0 0.0
    %986 = vmatpush.msra.mxu0 0.0
    %987 = vmatpush.msra.mxu0 0.0
    %988 = vmatpush.msra.mxu0 0.0
    %989 = vmatpush.msra.mxu0 0.0
    %990 = vmatpush.msra.mxu0 0.0
    %v991 = vand.u32 %v104, 4294901760
    %v992 = vsub.f32 %v104, %v991
    %v993 = vand.u32 %v992, 4294901760
    %v994 = vsub.f32 %v992, %v993
    %v995 = vand.u32 %v994, 4294901760
    %996 = vmatpush.msra.mxu0 %v995
    %v997 = vand.u32 %v103, 4294901760
    %v998 = vsub.f32 %v103, %v997
    %v999 = vand.u32 %v998, 4294901760
    %v1000 = vsub.f32 %v998, %v999
    %v1001 = vand.u32 %v1000, 4294901760
    %1002 = vmatpush.msra.mxu0 %v1001
    %v1003 = vand.u32 %v102, 4294901760
    %v1004 = vsub.f32 %v102, %v1003
    %v1005 = vand.u32 %v1004, 4294901760
    %v1006 = vsub.f32 %v1004, %v1005
    %v1007 = vand.u32 %v1006, 4294901760
    %1008 = vmatpush.msra.mxu0 %v1007
    %v1009 = vand.u32 %v101, 4294901760
    %v1010 = vsub.f32 %v101, %v1009
    %v1011 = vand.u32 %v1010, 4294901760
    %v1012 = vsub.f32 %v1010, %v1011
    %v1013 = vand.u32 %v1012, 4294901760
    %1014 = vmatpush.msra.mxu0 %v1013
    %v1015 = vand.u32 %v100, 4294901760
    %v1016 = vsub.f32 %v100, %v1015
    %v1017 = vand.u32 %v1016, 4294901760
    %v1018 = vsub.f32 %v1016, %v1017
    %v1019 = vand.u32 %v1018, 4294901760
    %1020 = vmatpush.msra.mxu0 %v1019
    %v1021 = vand.u32 %v99, 4294901760
    %v1022 = vsub.f32 %v99, %v1021
    %v1023 = vand.u32 %v1022, 4294901760
    %v1024 = vsub.f32 %v1022, %v1023
    %v1025 = vand.u32 %v1024, 4294901760
    %1026 = vmatpush.msra.mxu0 %v1025
    %v1027 = vand.u32 %v107, 4294901760
    %1028 = vmatmul.f32.gmra.mxu0 %v1027
    %v1029 = vpop.f32.mrf.mxu0
    %v1030 = vadd.f32 %v859, %v1029
    %v1031 = vand.u32 %v110, 4294901760
    %1032 = vmatmul.f32.gmra.mxu0 %v1031
    %v1033 = vpop.f32.mrf.mxu0
    %v1034 = vadd.f32 %v867, %v1033
    %v1035 = vand.u32 %v113, 4294901760
    %1036 = vmatmul.f32.gmra.mxu0 %v1035
    %v1037 = vpop.f32.mrf.mxu0
    %v1038 = vadd.f32 %v875, %v1037
    %v1039 = vand.u32 %v116, 4294901760
    %1040 = vmatmul.f32.gmra.mxu0 %v1039
    %v1041 = vpop.f32.mrf.mxu0
    %v1042 = vadd.f32 %v883, %v1041
    %v1043 = vand.u32 %v119, 4294901760
    %1044 = vmatmul.f32.gmra.mxu0 %v1043
    %v1045 = vpop.f32.mrf.mxu0
    %v1046 = vadd.f32 %v891, %v1045
    %v1047 = vand.u32 %v122, 4294901760
    %1048 = vmatmul.f32.gmra.mxu0 %v1047
    %v1049 = vpop.f32.mrf.mxu0
    %v1050 = vadd.f32 %v899, %v1049
    %v1051 = vand.u32 %v125, 4294901760
    %1052 = vmatmul.f32.gmra.mxu0 %v1051
    %v1053 = vpop.f32.mrf.mxu0
    %v1054 = vadd.f32 %v907, %v1053
    %v1055 = vand.u32 %v128, 4294901760
    %1056 = vmatmul.f32.gmra.mxu0 %v1055
    %v1057 = vpop.f32.mrf.mxu0
    %v1058 = vadd.f32 %v915, %v1057
    %v1059 = vand.u32 %v131, 4294901760
    %1060 = vmatmul.f32.gmra.mxu0 %v1059
    %v1061 = vpop.f32.mrf.mxu0
    %v1062 = vadd.f32 %v923, %v1061
    %v1063 = vand.u32 %v134, 4294901760
    %1064 = vmatmul.f32.gmra.mxu0 %v1063
    %v1065 = vpop.f32.mrf.mxu0
    %v1066 = vadd.f32 %v931, %v1065
    %v1067 = vand.u32 %v137, 4294901760
    %1068 = vmatmul.f32.gmra.mxu0 %v1067
    %v1069 = vpop.f32.mrf.mxu0
    %v1070 = vadd.f32 %v939, %v1069
    %v1071 = vand.u32 %v140, 4294901760
    %1072 = vmatmul.f32.gmra.mxu0 %v1071
    %v1073 = vpop.f32.mrf.mxu0
    %v1074 = vadd.f32 %v947, %v1073
    %v1075 = vand.u32 %v143, 4294901760
    %1076 = vmatmul.f32.gmra.mxu0 %v1075
    %v1077 = vpop.f32.mrf.mxu0
    %v1078 = vadd.f32 %v955, %v1077
    %v1079 = vand.u32 %v146, 4294901760
    %1080 = vmatmul.f32.gmra.mxu0 %v1079
    %v1081 = vpop.f32.mrf.mxu0
    %v1082 = vadd.f32 %v963, %v1081
    %v1083 = vand.u32 %v149, 4294901760
    %1084 = vmatmul.f32.gmra.mxu0 %v1083
    %v1085 = vpop.f32.mrf.mxu0
    %v1086 = vadd.f32 %v971, %v1085
    %v1087 = vand.u32 %v152, 4294901760
    %1088 = vmatmul.f32.gmra.mxu0 %v1087
    %v1089 = vpop.f32.mrf.mxu0
    %v1090 = vadd.f32 %v979, %v1089
    %1091 = vdwg.mxu0
    %1092 = vmatpush.msra.mxu0 0.0
    %1093 = vmatpush.msra.mxu0 0.0
    %1094 = vmatpush.msra.mxu0 0.0
    %1095 = vmatpush.msra.mxu0 0.0
    %1096 = vmatpush.msra.mxu0 0.0
    %1097 = vmatpush.msra.mxu0 0.0
    %1098 = vmatpush.msra.mxu0 0.0
    %1099 = vmatpush.msra.mxu0 0.0
    %1100 = vmatpush.msra.mxu0 0.0
    %1101 = vmatpush.msra.mxu0 0.0
    %v1102 = vand.u32 %v104, 4294901760
    %v1103 = vsub.f32 %v104, %v1102
    %1104 = vmatpush.msra.mxu0 %v1103
    %v1105 = vand.u32 %v103, 4294901760
    %v1106 = vsub.f32 %v103, %v1105
    %1107 = vmatpush.msra.mxu0 %v1106
    %v1108 = vand.u32 %v102, 4294901760
    %v1109 = vsub.f32 %v102, %v1108
    %1110 = vmatpush.msra.mxu0 %v1109
    %v1111 = vand.u32 %v101, 4294901760
    %v1112 = vsub.f32 %v101, %v1111
    %1113 = vmatpush.msra.mxu0 %v1112
    %v1114 = vand.u32 %v100, 4294901760
    %v1115 = vsub.f32 %v100, %v1114
    %1116 = vmatpush.msra.mxu0 %v1115
    %v1117 = vand.u32 %v99, 4294901760
    %v1118 = vsub.f32 %v99, %v1117
    %1119 = vmatpush.msra.mxu0 %v1118
    %v1120 = vand.u32 %v107, 4294901760
    %v1121 = vsub.f32 %v107, %v1120
    %1122 = vmatmul.f32.gmra.mxu0 %v1121
    %v1123 = vpop.f32.mrf.mxu0
    %v1124 = vadd.f32 %v1030, %v1123
    %v1125 = vand.u32 %v110, 4294901760
    %v1126 = vsub.f32 %v110, %v1125
    %1127 = vmatmul.f32.gmra.mxu0 %v1126
    %v1128 = vpop.f32.mrf.mxu0
    %v1129 = vadd.f32 %v1034, %v1128
    %v1130 = vand.u32 %v113, 4294901760
    %v1131 = vsub.f32 %v113, %v1130
    %1132 = vmatmul.f32.gmra.mxu0 %v1131
    %v1133 = vpop.f32.mrf.mxu0
    %v1134 = vadd.f32 %v1038, %v1133
    %v1135 = vand.u32 %v116, 4294901760
    %v1136 = vsub.f32 %v116, %v1135
    %1137 = vmatmul.f32.gmra.mxu0 %v1136
    %v1138 = vpop.f32.mrf.mxu0
    %v1139 = vadd.f32 %v1042, %v1138
    %v1140 = vand.u32 %v119, 4294901760
    %v1141 = vsub.f32 %v119, %v1140
    %1142 = vmatmul.f32.gmra.mxu0 %v1141
    %v1143 = vpop.f32.mrf.mxu0
    %v1144 = vadd.f32 %v1046, %v1143
    %v1145 = vand.u32 %v122, 4294901760
    %v1146 = vsub.f32 %v122, %v1145
    %1147 = vmatmul.f32.gmra.mxu0 %v1146
    %v1148 = vpop.f32.mrf.mxu0
    %v1149 = vadd.f32 %v1050, %v1148
    %v1150 = vand.u32 %v125, 4294901760
    %v1151 = vsub.f32 %v125, %v1150
    %1152 = vmatmul.f32.gmra.mxu0 %v1151
    %v1153 = vpop.f32.mrf.mxu0
    %v1154 = vadd.f32 %v1054, %v1153
    %v1155 = vand.u32 %v128, 4294901760
    %v1156 = vsub.f32 %v128, %v1155
    %1157 = vmatmul.f32.gmra.mxu0 %v1156
    %v1158 = vpop.f32.mrf.mxu0
    %v1159 = vadd.f32 %v1058, %v1158
    %v1160 = vand.u32 %v131, 4294901760
    %v1161 = vsub.f32 %v131, %v1160
    %1162 = vmatmul.f32.gmra.mxu0 %v1161
    %v1163 = vpop.f32.mrf.mxu0
    %v1164 = vadd.f32 %v1062, %v1163
    %v1165 = vand.u32 %v134, 4294901760
    %v1166 = vsub.f32 %v134, %v1165
    %1167 = vmatmul.f32.gmra.mxu0 %v1166
    %v1168 = vpop.f32.mrf.mxu0
    %v1169 = vadd.f32 %v1066, %v1168
    %v1170 = vand.u32 %v137, 4294901760
    %v1171 = vsub.f32 %v137, %v1170
    %1172 = vmatmul.f32.gmra.mxu0 %v1171
    %v1173 = vpop.f32.mrf.mxu0
    %v1174 = vadd.f32 %v1070, %v1173
    %v1175 = vand.u32 %v140, 4294901760
    %v1176 = vsub.f32 %v140, %v1175
    %1177 = vmatmul.f32.gmra.mxu0 %v1176
    %v1178 = vpop.f32.mrf.mxu0
    %v1179 = vadd.f32 %v1074, %v1178
    %v1180 = vand.u32 %v143, 4294901760
    %v1181 = vsub.f32 %v143, %v1180
    %1182 = vmatmul.f32.gmra.mxu0 %v1181
    %v1183 = vpop.f32.mrf.mxu0
    %v1184 = vadd.f32 %v1078, %v1183
    %v1185 = vand.u32 %v146, 4294901760
    %v1186 = vsub.f32 %v146, %v1185
    %1187 = vmatmul.f32.gmra.mxu0 %v1186
    %v1188 = vpop.f32.mrf.mxu0
    %v1189 = vadd.f32 %v1082, %v1188
    %v1190 = vand.u32 %v149, 4294901760
    %v1191 = vsub.f32 %v149, %v1190
    %1192 = vmatmul.f32.gmra.mxu0 %v1191
    %v1193 = vpop.f32.mrf.mxu0
    %v1194 = vadd.f32 %v1086, %v1193
    %v1195 = vand.u32 %v152, 4294901760
    %v1196 = vsub.f32 %v152, %v1195
    %1197 = vmatmul.f32.gmra.mxu0 %v1196
    %v1198 = vpop.f32.mrf.mxu0
    %v1199 = vadd.f32 %v1090, %v1198
    %1200 = vdwg.mxu0
    %1201 = vmatpush.msra.mxu0 0.0
    %1202 = vmatpush.msra.mxu0 0.0
    %1203 = vmatpush.msra.mxu0 0.0
    %1204 = vmatpush.msra.mxu0 0.0
    %1205 = vmatpush.msra.mxu0 0.0
    %1206 = vmatpush.msra.mxu0 0.0
    %1207 = vmatpush.msra.mxu0 0.0
    %1208 = vmatpush.msra.mxu0 0.0
    %1209 = vmatpush.msra.mxu0 0.0
    %1210 = vmatpush.msra.mxu0 0.0
    %v1211 = vand.u32 %v104, 4294901760
    %1212 = vmatpush.msra.mxu0 %v1211
    %v1213 = vand.u32 %v103, 4294901760
    %1214 = vmatpush.msra.mxu0 %v1213
    %v1215 = vand.u32 %v102, 4294901760
    %1216 = vmatpush.msra.mxu0 %v1215
    %v1217 = vand.u32 %v101, 4294901760
    %1218 = vmatpush.msra.mxu0 %v1217
    %v1219 = vand.u32 %v100, 4294901760
    %1220 = vmatpush.msra.mxu0 %v1219
    %v1221 = vand.u32 %v99, 4294901760
    %1222 = vmatpush.msra.mxu0 %v1221
    %v1223 = vand.u32 %v107, 4294901760
    %v1224 = vsub.f32 %v107, %v1223
    %v1225 = vand.u32 %v1224, 4294901760
    %1226 = vmatmul.f32.gmra.mxu0 %v1225
    %v1227 = vpop.f32.mrf.mxu0
    %v1228 = vadd.f32 %v1124, %v1227
    %v1229 = vand.u32 %v110, 4294901760
    %v1230 = vsub.f32 %v110, %v1229
    %v1231 = vand.u32 %v1230, 4294901760
    %1232 = vmatmul.f32.gmra.mxu0 %v1231
    %v1233 = vpop.f32.mrf.mxu0
    %v1234 = vadd.f32 %v1129, %v1233
    %v1235 = vand.u32 %v113, 4294901760
    %v1236 = vsub.f32 %v113, %v1235
    %v1237 = vand.u32 %v1236, 4294901760
    %1238 = vmatmul.f32.gmra.mxu0 %v1237
    %v1239 = vpop.f32.mrf.mxu0
    %v1240 = vadd.f32 %v1134, %v1239
    %v1241 = vand.u32 %v116, 4294901760
    %v1242 = vsub.f32 %v116, %v1241
    %v1243 = vand.u32 %v1242, 4294901760
    %1244 = vmatmul.f32.gmra.mxu0 %v1243
    %v1245 = vpop.f32.mrf.mxu0
    %v1246 = vadd.f32 %v1139, %v1245
    %v1247 = vand.u32 %v119, 4294901760
    %v1248 = vsub.f32 %v119, %v1247
    %v1249 = vand.u32 %v1248, 4294901760
    %1250 = vmatmul.f32.gmra.mxu0 %v1249
    %v1251 = vpop.f32.mrf.mxu0
    %v1252 = vadd.f32 %v1144, %v1251
    %v1253 = vand.u32 %v122, 4294901760
    %v1254 = vsub.f32 %v122, %v1253
    %v1255 = vand.u32 %v1254, 4294901760
    %1256 = vmatmul.f32.gmra.mxu0 %v1255
    %v1257 = vpop.f32.mrf.mxu0
    %v1258 = vadd.f32 %v1149, %v1257
    %v1259 = vand.u32 %v125, 4294901760
    %v1260 = vsub.f32 %v125, %v1259
    %v1261 = vand.u32 %v1260, 4294901760
    %1262 = vmatmul.f32.gmra.mxu0 %v1261
    %v1263 = vpop.f32.mrf.mxu0
    %v1264 = vadd.f32 %v1154, %v1263
    %v1265 = vand.u32 %v128, 4294901760
    %v1266 = vsub.f32 %v128, %v1265
    %v1267 = vand.u32 %v1266, 4294901760
    %1268 = vmatmul.f32.gmra.mxu0 %v1267
    %v1269 = vpop.f32.mrf.mxu0
    %v1270 = vadd.f32 %v1159, %v1269
    %v1271 = vand.u32 %v131, 4294901760
    %v1272 = vsub.f32 %v131, %v1271
    %v1273 = vand.u32 %v1272, 4294901760
    %1274 = vmatmul.f32.gmra.mxu0 %v1273
    %v1275 = vpop.f32.mrf.mxu0
    %v1276 = vadd.f32 %v1164, %v1275
    %v1277 = vand.u32 %v134, 4294901760
    %v1278 = vsub.f32 %v134, %v1277
    %v1279 = vand.u32 %v1278, 4294901760
    %1280 = vmatmul.f32.gmra.mxu0 %v1279
    %v1281 = vpop.f32.mrf.mxu0
    %v1282 = vadd.f32 %v1169, %v1281
    %v1283 = vand.u32 %v137, 4294901760
    %v1284 = vsub.f32 %v137, %v1283
    %v1285 = vand.u32 %v1284, 4294901760
    %1286 = vmatmul.f32.gmra.mxu0 %v1285
    %v1287 = vpop.f32.mrf.mxu0
    %v1288 = vadd.f32 %v1174, %v1287
    %v1289 = vand.u32 %v140, 4294901760
    %v1290 = vsub.f32 %v140, %v1289
    %v1291 = vand.u32 %v1290, 4294901760
    %1292 = vmatmul.f32.gmra.mxu0 %v1291
    %v1293 = vpop.f32.mrf.mxu0
    %v1294 = vadd.f32 %v1179, %v1293
    %v1295 = vand.u32 %v143, 4294901760
    %v1296 = vsub.f32 %v143, %v1295
    %v1297 = vand.u32 %v1296, 4294901760
    %1298 = vmatmul.f32.gmra.mxu0 %v1297
    %v1299 = vpop.f32.mrf.mxu0
    %v1300 = vadd.f32 %v1184, %v1299
    %v1301 = vand.u32 %v146, 4294901760
    %v1302 = vsub.f32 %v146, %v1301
    %v1303 = vand.u32 %v1302, 4294901760
    %1304 = vmatmul.f32.gmra.mxu0 %v1303
    %v1305 = vpop.f32.mrf.mxu0
    %v1306 = vadd.f32 %v1189, %v1305
    %v1307 = vand.u32 %v149, 4294901760
    %v1308 = vsub.f32 %v149, %v1307
    %v1309 = vand.u32 %v1308, 4294901760
    %1310 = vmatmul.f32.gmra.mxu0 %v1309
    %v1311 = vpop.f32.mrf.mxu0
    %v1312 = vadd.f32 %v1194, %v1311
    %v1313 = vand.u32 %v152, 4294901760
    %v1314 = vsub.f32 %v152, %v1313
    %v1315 = vand.u32 %v1314, 4294901760
    %1316 = vmatmul.f32.gmra.mxu0 %v1315
    %v1317 = vpop.f32.mrf.mxu0
    %v1318 = vadd.f32 %v1199, %v1317
    %1319 = vdwg.mxu0
    %1320 = vmatpush.msra.mxu0 0.0
    %1321 = vmatpush.msra.mxu0 0.0
    %1322 = vmatpush.msra.mxu0 0.0
    %1323 = vmatpush.msra.mxu0 0.0
    %1324 = vmatpush.msra.mxu0 0.0
    %1325 = vmatpush.msra.mxu0 0.0
    %1326 = vmatpush.msra.mxu0 0.0
    %1327 = vmatpush.msra.mxu0 0.0
    %1328 = vmatpush.msra.mxu0 0.0
    %1329 = vmatpush.msra.mxu0 0.0
    %v1330 = vand.u32 %v104, 4294901760
    %v1331 = vsub.f32 %v104, %v1330
    %v1332 = vand.u32 %v1331, 4294901760
    %1333 = vmatpush.msra.mxu0 %v1332
    %v1334 = vand.u32 %v103, 4294901760
    %v1335 = vsub.f32 %v103, %v1334
    %v1336 = vand.u32 %v1335, 4294901760
    %1337 = vmatpush.msra.mxu0 %v1336
    %v1338 = vand.u32 %v102, 4294901760
    %v1339 = vsub.f32 %v102, %v1338
    %v1340 = vand.u32 %v1339, 4294901760
    %1341 = vmatpush.msra.mxu0 %v1340
    %v1342 = vand.u32 %v101, 4294901760
    %v1343 = vsub.f32 %v101, %v1342
    %v1344 = vand.u32 %v1343, 4294901760
    %1345 = vmatpush.msra.mxu0 %v1344
    %v1346 = vand.u32 %v100, 4294901760
    %v1347 = vsub.f32 %v100, %v1346
    %v1348 = vand.u32 %v1347, 4294901760
    %1349 = vmatpush.msra.mxu0 %v1348
    %v1350 = vand.u32 %v99, 4294901760
    %v1351 = vsub.f32 %v99, %v1350
    %v1352 = vand.u32 %v1351, 4294901760
    %1353 = vmatpush.msra.mxu0 %v1352
    %v1354 = vand.u32 %v107, 4294901760
    %1355 = vmatmul.f32.gmra.mxu0 %v1354
    %v1356 = vpop.f32.mrf.mxu0
    %v1357 = vadd.f32 %v1228, %v1356
    %v1358 = vand.u32 %v110, 4294901760
    %1359 = vmatmul.f32.gmra.mxu0 %v1358
    %v1360 = vpop.f32.mrf.mxu0
    %v1361 = vadd.f32 %v1234, %v1360
    %v1362 = vand.u32 %v113, 4294901760
    %1363 = vmatmul.f32.gmra.mxu0 %v1362
    %v1364 = vpop.f32.mrf.mxu0
    %v1365 = vadd.f32 %v1240, %v1364
    %v1366 = vand.u32 %v116, 4294901760
    %1367 = vmatmul.f32.gmra.mxu0 %v1366
    %v1368 = vpop.f32.mrf.mxu0
    %v1369 = vadd.f32 %v1246, %v1368
    %v1370 = vand.u32 %v119, 4294901760
    %1371 = vmatmul.f32.gmra.mxu0 %v1370
    %v1372 = vpop.f32.mrf.mxu0
    %v1373 = vadd.f32 %v1252, %v1372
    %v1374 = vand.u32 %v122, 4294901760
    %1375 = vmatmul.f32.gmra.mxu0 %v1374
    %v1376 = vpop.f32.mrf.mxu0
    %v1377 = vadd.f32 %v1258, %v1376
    %v1378 = vand.u32 %v125, 4294901760
    %1379 = vmatmul.f32.gmra.mxu0 %v1378
    %v1380 = vpop.f32.mrf.mxu0
    %v1381 = vadd.f32 %v1264, %v1380
    %v1382 = vand.u32 %v128, 4294901760
    %1383 = vmatmul.f32.gmra.mxu0 %v1382
    %v1384 = vpop.f32.mrf.mxu0
    %v1385 = vadd.f32 %v1270, %v1384
    %v1386 = vand.u32 %v131, 4294901760
    %1387 = vmatmul.f32.gmra.mxu0 %v1386
    %v1388 = vpop.f32.mrf.mxu0
    %v1389 = vadd.f32 %v1276, %v1388
    %v1390 = vand.u32 %v134, 4294901760
    %1391 = vmatmul.f32.gmra.mxu0 %v1390
    %v1392 = vpop.f32.mrf.mxu0
    %v1393 = vadd.f32 %v1282, %v1392
    %v1394 = vand.u32 %v137, 4294901760
    %1395 = vmatmul.f32.gmra.mxu0 %v1394
    %v1396 = vpop.f32.mrf.mxu0
    %v1397 = vadd.f32 %v1288, %v1396
    %v1398 = vand.u32 %v140, 4294901760
    %1399 = vmatmul.f32.gmra.mxu0 %v1398
    %v1400 = vpop.f32.mrf.mxu0
    %v1401 = vadd.f32 %v1294, %v1400
    %v1402 = vand.u32 %v143, 4294901760
    %1403 = vmatmul.f32.gmra.mxu0 %v1402
    %v1404 = vpop.f32.mrf.mxu0
    %v1405 = vadd.f32 %v1300, %v1404
    %v1406 = vand.u32 %v146, 4294901760
    %1407 = vmatmul.f32.gmra.mxu0 %v1406
    %v1408 = vpop.f32.mrf.mxu0
    %v1409 = vadd.f32 %v1306, %v1408
    %v1410 = vand.u32 %v149, 4294901760
    %1411 = vmatmul.f32.gmra.mxu0 %v1410
    %v1412 = vpop.f32.mrf.mxu0
    %v1413 = vadd.f32 %v1312, %v1412
    %v1414 = vand.u32 %v152, 4294901760
    %1415 = vmatmul.f32.gmra.mxu0 %v1414
    %v1416 = vpop.f32.mrf.mxu0
    %v1417 = vadd.f32 %v1318, %v1416
    %1418 = vdwg.mxu0
    %1419 = vmatpush.msra.mxu0 0.0
    %1420 = vmatpush.msra.mxu0 0.0
    %1421 = vmatpush.msra.mxu0 0.0
    %1422 = vmatpush.msra.mxu0 0.0
    %1423 = vmatpush.msra.mxu0 0.0
    %1424 = vmatpush.msra.mxu0 0.0
    %1425 = vmatpush.msra.mxu0 0.0
    %1426 = vmatpush.msra.mxu0 0.0
    %1427 = vmatpush.msra.mxu0 0.0
    %1428 = vmatpush.msra.mxu0 0.0
    %v1429 = vand.u32 %v104, 4294901760
    %1430 = vmatpush.msra.mxu0 %v1429
    %v1431 = vand.u32 %v103, 4294901760
    %1432 = vmatpush.msra.mxu0 %v1431
    %v1433 = vand.u32 %v102, 4294901760
    %1434 = vmatpush.msra.mxu0 %v1433
    %v1435 = vand.u32 %v101, 4294901760
    %1436 = vmatpush.msra.mxu0 %v1435
    %v1437 = vand.u32 %v100, 4294901760
    %1438 = vmatpush.msra.mxu0 %v1437
    %v1439 = vand.u32 %v99, 4294901760
    %1440 = vmatpush.msra.mxu0 %v1439
    %v1441 = vand.u32 %v107, 4294901760
    %1442 = vmatmul.f32.gmra.mxu0 %v1441
    %v1443 = vpop.f32.mrf.mxu0
    %v1444 = vadd.f32 %v1357, %v1443
    %v1445 = vand.u32 %v110, 4294901760
    %1446 = vmatmul.f32.gmra.mxu0 %v1445
    %v1447 = vpop.f32.mrf.mxu0
    %v1448 = vadd.f32 %v1361, %v1447
    %v1449 = vand.u32 %v113, 4294901760
    %1450 = vmatmul.f32.gmra.mxu0 %v1449
    %v1451 = vpop.f32.mrf.mxu0
    %v1452 = vadd.f32 %v1365, %v1451
    %v1453 = vand.u32 %v116, 4294901760
    %1454 = vmatmul.f32.gmra.mxu0 %v1453
    %v1455 = vpop.f32.mrf.mxu0
    %v1456 = vadd.f32 %v1369, %v1455
    %v1457 = vand.u32 %v119, 4294901760
    %1458 = vmatmul.f32.gmra.mxu0 %v1457
    %v1459 = vpop.f32.mrf.mxu0
    %v1460 = vadd.f32 %v1373, %v1459
    %v1461 = vand.u32 %v122, 4294901760
    %1462 = vmatmul.f32.gmra.mxu0 %v1461
    %v1463 = vpop.f32.mrf.mxu0
    %v1464 = vadd.f32 %v1377, %v1463
    %v1465 = vand.u32 %v125, 4294901760
    %1466 = vmatmul.f32.gmra.mxu0 %v1465
    %v1467 = vpop.f32.mrf.mxu0
    %v1468 = vadd.f32 %v1381, %v1467
    %v1469 = vand.u32 %v128, 4294901760
    %1470 = vmatmul.f32.gmra.mxu0 %v1469
    %v1471 = vpop.f32.mrf.mxu0
    %v1472 = vadd.f32 %v1385, %v1471
    %v1473 = vand.u32 %v131, 4294901760
    %1474 = vmatmul.f32.gmra.mxu0 %v1473
    %v1475 = vpop.f32.mrf.mxu0
    %v1476 = vadd.f32 %v1389, %v1475
    %v1477 = vand.u32 %v134, 4294901760
    %1478 = vmatmul.f32.gmra.mxu0 %v1477
    %v1479 = vpop.f32.mrf.mxu0
    %v1480 = vadd.f32 %v1393, %v1479
    %v1481 = vand.u32 %v137, 4294901760
    %1482 = vmatmul.f32.gmra.mxu0 %v1481
    %v1483 = vpop.f32.mrf.mxu0
    %v1484 = vadd.f32 %v1397, %v1483
    %v1485 = vand.u32 %v140, 4294901760
    %1486 = vmatmul.f32.gmra.mxu0 %v1485
    %v1487 = vpop.f32.mrf.mxu0
    %v1488 = vadd.f32 %v1401, %v1487
    %v1489 = vand.u32 %v143, 4294901760
    %1490 = vmatmul.f32.gmra.mxu0 %v1489
    %v1491 = vpop.f32.mrf.mxu0
    %v1492 = vadd.f32 %v1405, %v1491
    %v1493 = vand.u32 %v146, 4294901760
    %1494 = vmatmul.f32.gmra.mxu0 %v1493
    %v1495 = vpop.f32.mrf.mxu0
    %v1496 = vadd.f32 %v1409, %v1495
    %v1497 = vand.u32 %v149, 4294901760
    %1498 = vmatmul.f32.gmra.mxu0 %v1497
    %v1499 = vpop.f32.mrf.mxu0
    %v1500 = vadd.f32 %v1413, %v1499
    %v1501 = vand.u32 %v152, 4294901760
    %1502 = vmatmul.f32.gmra.mxu0 %v1501
    %v1503 = vpop.f32.mrf.mxu0
    %v1504 = vadd.f32 %v1417, %v1503
    %1505 = vdwg.mxu0
    %v1506 = vmul.f32 %v768, %v768
    %v1507 = vmul.f32 %v1444, %v1444
    %v1508 = vmul.f32 %v772, %v772
    %v1509 = vmul.f32 %v1448, %v1448
    %v1510 = vmul.f32 %v776, %v776
    %v1511 = vmul.f32 %v1452, %v1452
    %v1512 = vmul.f32 %v780, %v780
    %v1513 = vmul.f32 %v1456, %v1456
    %v1514 = vmul.f32 %v784, %v784
    %v1515 = vmul.f32 %v1460, %v1460
    %v1516 = vmul.f32 %v788, %v788
    %v1517 = vmul.f32 %v1464, %v1464
    %v1518 = vmul.f32 %v792, %v792
    %v1519 = vmul.f32 %v1468, %v1468
    %v1520 = vmul.f32 %v796, %v796
    %v1521 = vmul.f32 %v1472, %v1472
    %v1522 = vmul.f32 %v800, %v800
    %v1523 = vmul.f32 %v1476, %v1476
    %v1524 = vmul.f32 %v804, %v804
    %v1525 = vmul.f32 %v1480, %v1480
    %v1526 = vmul.f32 %v808, %v808
    %v1527 = vmul.f32 %v1484, %v1484
    %v1528 = vmul.f32 %v812, %v812
    %v1529 = vmul.f32 %v1488, %v1488
    %v1530 = vmul.f32 %v816, %v816
    %v1531 = vmul.f32 %v1492, %v1492
    %v1532 = vmul.f32 %v820, %v820
    %v1533 = vmul.f32 %v1496, %v1496
    %v1534 = vmul.f32 %v824, %v824
    %v1535 = vmul.f32 %v1500, %v1500
    %v1536 = vmul.f32 %v828, %v828
    %v1537 = vmul.f32 %v1504, %v1504
    %v1538 = vadd.f32 %v1506, %v1508
    %v1539 = vadd.f32 %v1538, %v1510
    %v1540 = vadd.f32 %v1539, %v1512
    %v1541 = vadd.f32 %v1540, %v1514
    %v1542 = vadd.f32 %v1541, %v1516
    %v1543 = vadd.f32 %v1542, %v1518
    %v1544 = vadd.f32 %v1543, %v1520
    %v1545 = vadd.f32 %v1544, %v1522
    %v1546 = vadd.f32 %v1545, %v1524
    %v1547 = vadd.f32 %v1546, %v1526
    %v1548 = vadd.f32 %v1547, %v1528
    %v1549 = vadd.f32 %v1548, %v1530
    %v1550 = vadd.f32 %v1549, %v1532
    %v1551 = vadd.f32 %v1550, %v1534
    %v1552 = vadd.f32 %v1551, %v1536
    %v1553 = vrot.slane %v1552, 4
    %v1554 = vadd.f32 %v1552, %v1553
    %v1555 = vrot.slane %v1554, 2
    %v1556 = vadd.f32 %v1554, %v1555
    %v1557 = vrot.slane %v1556, 1
    %v1558 = vadd.f32 %v1556, %v1557
    %v1559 = vadd.f32 %v1507, %v1509
    %v1560 = vadd.f32 %v1559, %v1511
    %v1561 = vadd.f32 %v1560, %v1513
    %v1562 = vadd.f32 %v1561, %v1515
    %v1563 = vadd.f32 %v1562, %v1517
    %v1564 = vadd.f32 %v1563, %v1519
    %v1565 = vadd.f32 %v1564, %v1521
    %v1566 = vadd.f32 %v1565, %v1523
    %v1567 = vadd.f32 %v1566, %v1525
    %v1568 = vadd.f32 %v1567, %v1527
    %v1569 = vadd.f32 %v1568, %v1529
    %v1570 = vadd.f32 %v1569, %v1531
    %v1571 = vadd.f32 %v1570, %v1533
    %v1572 = vadd.f32 %v1571, %v1535
    %v1573 = vadd.f32 %v1572, %v1537
    %v1574 = vrot.slane %v1573, 4
    %v1575 = vadd.f32 %v1573, %v1574
    %v1576 = vrot.slane %v1575, 2
    %v1577 = vadd.f32 %v1575, %v1576
    %v1578 = vrot.slane %v1577, 1
    %v1579 = vadd.f32 %v1577, %v1578
    %v1580 = vrsqrt.pop %v1558
    %v1581 = vmul.f32 %v1580, %v1558
    %v1582 = vmul.f32 %v1581, %v1580
    %v1583 = vmul.f32 0.5, %v1582
    %v1584 = vsub.f32 1.5, %v1583
    %v1585 = vmul.f32 %v1580, %v1584
    %v1586 = vmul.f32 %v1558, %v1585
    %vm1587 = vcmp.eq.f32.partialorder %v1558, inf
    %v1588 = vsel %vm1587, %v1558, %v1586
    %vm1589 = vcmp.eq.f32.partialorder %v1558, 0.0
    %v1590 = vand.u32 %v1558, 2147483648
    %v1591 = vsel %vm1589, %v1590, %v1588
    %v1592 = vrsqrt.pop %v1579
    %v1593 = vmul.f32 %v1592, %v1579
    %v1594 = vmul.f32 %v1593, %v1592
    %v1595 = vmul.f32 0.5, %v1594
    %v1596 = vsub.f32 1.5, %v1595
    %v1597 = vmul.f32 %v1592, %v1596
    %v1598 = vmul.f32 %v1579, %v1597
    %vm1599 = vcmp.eq.f32.partialorder %v1579, inf
    %v1600 = vsel %vm1599, %v1579, %v1598
    %vm1601 = vcmp.eq.f32.partialorder %v1579, 0.0
    %v1602 = vand.u32 %v1579, 2147483648
    %v1603 = vsel %vm1601, %v1602, %v1600
    %vm1604 = vcmask 1040384
    %v1605 = vsel %vm1604, %v1591, %v1603
    %1606 = vst [vmem:[#allocation2] sm:$0x3] %v1605
    // Predicated region
    $region10: #{tpu_custom_call.1} parent=1 // pred_check
      _
    $region11: #{tpu_custom_call.1} parent=1 // pred_check_branch
      %1608 = sbr.rel (0) target = $region13
    $region12: #{tpu_custom_call.1} parent=1 // pred_region
      %1610 = vsyncadd [#allocation3], 0
      %s1612 = sshll.u32 [#allocation2], 4
      %s1613 = int_to_ptr.vmem [resolvable:$true] %s1612
      %s1614 = sshll.u32 %s2, 4
      %s1615 = int_to_ptr.hbm [resolvable:$true] %s1614
      %1617 = dma.vmem_to_hbm [thread:$0]  %s1613, 32, %s1615, [#allocation3]
    $region13: #{tpu_custom_call.1} parent=1 // pred_fallthru
      _
    // Predicated region
    $region14: #{tpu_custom_call.1} parent=1 // pred_check
      _
    $region15: #{tpu_custom_call.1} parent=1 // pred_check_branch
      %1619 = sbr.rel (0) target = $region17
    $region16: #{tpu_custom_call.1} parent=1 // pred_region
      %1621 = dma.done [#allocation3], 32
    $region17: #{tpu_custom_call.1} parent=1 // pred_fallthru
      _
    %1622 = vsyncpa [#allocation3], 1

// kernel: tpu_custom_call.1
$region0: #{tpu_custom_call.1}
  #allocation0 [shape = 'u32[]', space=smem, size = 0x4, offset = 0x4, fixed_abs, tag = 'smem constant byte address 0x4 - core index']
  #allocation1 [shape = 'u32[72,128]{1,0:T(1,128)}', space=vmem, size = 0x9000, scoped, tag = 'internal scratch']
  %s0 = inlined_call_operand.vmem [shape: s32[3,128], index: 0, kind: input, shape index: {}]
  %s1 = inlined_call_operand.vmem [shape: f32[128,48], index: 1, kind: input, shape index: {}]
  %s2 = inlined_call_operand.hbm [shape: f32[2,128], index: 2, kind: output, shape index: {}]
  %s3 = sld [smem:[#allocation0]]
  $region18: #{tpu_custom_call.1} parent=0
    _
  %s5 = ssub.s32 1, %s3
  %s6 = scalar_select 0, %s5, %s3
  $region1: #{tpu_custom_call.1} parent=0
    #allocation2 [shape = 'u8[1024]{0}', space=vmem, size = 0x400, scoped, tag = 'output window, operand 0, single buffered']
    #allocation3 [shape = 's32[1]{0}', space=sflag, size = 0x4, scoped, tag = 'scoped memory for tpu_custom_call.1']
    %7 = vsyncpa [#allocation3], 0
    // Predicated region
    $region2: #{tpu_custom_call.1} parent=1 // pred_check
      _
    $region3: #{tpu_custom_call.1} parent=1 // pred_check_branch
      %9 = sbr.rel (0) target = $region5
    $region4: #{tpu_custom_call.1} parent=1 // pred_region
      _
    $region5: #{tpu_custom_call.1} parent=1 // pred_fallthru
      _
    // Predicated region
    $region6: #{tpu_custom_call.1} parent=1 // pred_check
      _
    $region7: #{tpu_custom_call.1} parent=1 // pred_check_branch
      %11 = sbr.rel (0) target = $region9
    $region8: #{tpu_custom_call.1} parent=1 // pred_region
      _
    $region9: #{tpu_custom_call.1} parent=1 // pred_fallthru
      _
    %v12 = vld [vmem:[%s0] sm:$0x7]
    %v13 = vld [vmem:[%s1] sm:$0xff]
    %v14 = vld [vmem:[%s1 + $0x8] sm:$0xff]
    %v15 = vld [vmem:[%s1 + $0x10] sm:$0xff]
    %v16 = vld [vmem:[%s1 + $0x18] sm:$0xff]
    %v17 = vld [vmem:[%s1 + $0x20] sm:$0xff]
    %v18 = vld [vmem:[%s1 + $0x28] sm:$0xff]
    %v19 = vld [vmem:[%s1 + $0x30] sm:$0xff]
    %v20 = vld [vmem:[%s1 + $0x38] sm:$0xff]
    %v21 = vld [vmem:[%s1 + $0x40] sm:$0xff]
    %v22 = vld [vmem:[%s1 + $0x48] sm:$0xff]
    %v23 = vld [vmem:[%s1 + $0x50] sm:$0xff]
    %v24 = vld [vmem:[%s1 + $0x58] sm:$0xff]
    %v25 = vld [vmem:[%s1 + $0x60] sm:$0xff]
    %v26 = vld [vmem:[%s1 + $0x68] sm:$0xff]
    %v27 = vld [vmem:[%s1 + $0x70] sm:$0xff]
    %v28 = vld [vmem:[%s1 + $0x78] sm:$0xff]
    %v29 = vlaneseq
    %v30 = vshrl.u32 %v29, 7
    %v31 = vadd.s32 %v30, 8
    %v32 = vadd.s32 %v30, 16
    %v33 = vadd.s32 %v30, 24
    %v34 = vadd.s32 %v30, 32
    %v35 = vadd.s32 %v30, 40
    %v36 = vperm.slane %v12, 0
    %vm37 = vcmp.eq.s32.totalorder %v30, %v36
    %vm38 = vcmp.eq.s32.totalorder %v31, %v36
    %vm39 = vcmp.eq.s32.totalorder %v32, %v36
    %vm40 = vcmp.eq.s32.totalorder %v33, %v36
    %vm41 = vcmp.eq.s32.totalorder %v34, %v36
    %vm42 = vcmp.eq.s32.totalorder %v35, %v36
    %v43 = vsel %vm37, 1, 0
    %v44 = vsel %vm38, 1, 0
    %v45 = vsel %vm39, 1, 0
    %v46 = vsel %vm40, 1, 0
    %v47 = vsel %vm41, 1, 0
    %v48 = vsel %vm42, 1, 0
    %v49 = vcvt.s32.f32 %v43
    %v50 = vcvt.s32.f32 %v44
    %v51 = vcvt.s32.f32 %v45
    %v52 = vcvt.s32.f32 %v46
    %v53 = vcvt.s32.f32 %v47
    %v54 = vcvt.s32.f32 %v48
    %v55 = vperm.slane %v12, 1
    %vm56 = vcmp.eq.s32.totalorder %v30, %v55
    %vm57 = vcmp.eq.s32.totalorder %v31, %v55
    %vm58 = vcmp.eq.s32.totalorder %v32, %v55
    %vm59 = vcmp.eq.s32.totalorder %v33, %v55
    %vm60 = vcmp.eq.s32.totalorder %v34, %v55
    %vm61 = vcmp.eq.s32.totalorder %v35, %v55
    %v62 = vsel %vm56, 1, 0
    %v63 = vsel %vm57, 1, 0
    %v64 = vsel %vm58, 1, 0
    %v65 = vsel %vm59, 1, 0
    %v66 = vsel %vm60, 1, 0
    %v67 = vsel %vm61, 1, 0
    %v68 = vcvt.s32.f32 %v62
    %v69 = vcvt.s32.f32 %v63
    %v70 = vcvt.s32.f32 %v64
    %v71 = vcvt.s32.f32 %v65
    %v72 = vcvt.s32.f32 %v66
    %v73 = vcvt.s32.f32 %v67
    %v74 = vsub.f32 %v68, %v49
    %v75 = vsub.f32 %v69, %v50
    %v76 = vsub.f32 %v70, %v51
    %v77 = vsub.f32 %v71, %v52
    %v78 = vsub.f32 %v72, %v53
    %v79 = vsub.f32 %v73, %v54
    %v80 = vperm.slane %v12, 2
    %vm81 = vcmp.eq.s32.totalorder %v30, %v80
    %vm82 = vcmp.eq.s32.totalorder %v31, %v80
    %vm83 = vcmp.eq.s32.totalorder %v32, %v80
    %vm84 = vcmp.eq.s32.totalorder %v33, %v80
    %vm85 = vcmp.eq.s32.totalorder %v34, %v80
    %vm86 = vcmp.eq.s32.totalorder %v35, %v80
    %v87 = vsel %vm81, 1, 0
    %v88 = vsel %vm82, 1, 0
    %v89 = vsel %vm83, 1, 0
    %v90 = vsel %vm84, 1, 0
    %v91 = vsel %vm85, 1, 0
    %v92 = vsel %vm86, 1, 0
    %v93 = vcvt.s32.f32 %v87
    %v94 = vcvt.s32.f32 %v88
    %v95 = vcvt.s32.f32 %v89
    %v96 = vcvt.s32.f32 %v90
    %v97 = vcvt.s32.f32 %v91
    %v98 = vcvt.s32.f32 %v92
    %v99 = vsub.f32 %v93, %v49
    %v100 = vsub.f32 %v94, %v50
    %v101 = vsub.f32 %v95, %v51
    %v102 = vsub.f32 %v96, %v52
    %v103 = vsub.f32 %v97, %v53
    %v104 = vsub.f32 %v98, %v54
    %vm105 = vcmask 392192
    %v107 = vsel %vm105, %v13, 0
    %v110 = vsel %vm105, %v14, 0
    %v113 = vsel %vm105, %v15, 0
    %v116 = vsel %vm105, %v16, 0
    %v119 = vsel %vm105, %v17, 0
    %v122 = vsel %vm105, %v18, 0
    %v125 = vsel %vm105, %v19, 0
    %v128 = vsel %vm105, %v20, 0
    %v131 = vsel %vm105, %v21, 0
    %v134 = vsel %vm105, %v22, 0
    %v137 = vsel %vm105, %v23, 0
    %v140 = vsel %vm105, %v24, 0
    %v143 = vsel %vm105, %v25, 0
    %v146 = vsel %vm105, %v26, 0
    %v149 = vsel %vm105, %v27, 0
    %v152 = vsel %vm105, %v28, 0
    %154 = vmatpush.msra.mxu0 0.0
    %155 = vmatpush.msra.mxu0 0.0
    %156 = vmatpush.msra.mxu0 0.0
    %157 = vmatpush.msra.mxu0 0.0
    %158 = vmatpush.msra.mxu0 0.0
    %159 = vmatpush.msra.mxu0 0.0
    %160 = vmatpush.msra.mxu0 0.0
    %161 = vmatpush.msra.mxu0 0.0
    %162 = vmatpush.msra.mxu0 0.0
    %163 = vmatpush.msra.mxu0 0.0
    %v164 = vand.u32 %v79, 4294901760
    %165 = vmatpush.msra.mxu0 %v164
    %v166 = vand.u32 %v78, 4294901760
    %167 = vmatpush.msra.mxu0 %v166
    %v168 = vand.u32 %v77, 4294901760
    %169 = vmatpush.msra.mxu0 %v168
    %v170 = vand.u32 %v76, 4294901760
    %171 = vmatpush.msra.mxu0 %v170
    %v172 = vand.u32 %v75, 4294901760
    %173 = vmatpush.msra.mxu0 %v172
    %v174 = vand.u32 %v74, 4294901760
    %175 = vmatpush.msra.mxu0 %v174
    %v176 = vand.u32 %v107, 4294901760
    %v177 = vsub.f32 %v107, %v176
    %v178 = vand.u32 %v177, 4294901760
    %v179 = vsub.f32 %v177, %v178
    %v180 = vand.u32 %v179, 4294901760
    %181 = vmatmul.f32.gmra.mxu0 %v180
    %v182 = vpop.f32.mrf.mxu0
    %v183 = vadd.f32 0.0, %v182
    %v184 = vand.u32 %v110, 4294901760
    %v185 = vsub.f32 %v110, %v184
    %v186 = vand.u32 %v185, 4294901760
    %v187 = vsub.f32 %v185, %v186
    %v188 = vand.u32 %v187, 4294901760
    %189 = vmatmul.f32.gmra.mxu0 %v188
    %v190 = vpop.f32.mrf.mxu0
    %v191 = vadd.f32 0.0, %v190
    %v192 = vand.u32 %v113, 4294901760
    %v193 = vsub.f32 %v113, %v192
    %v194 = vand.u32 %v193, 4294901760
    %v195 = vsub.f32 %v193, %v194
    %v196 = vand.u32 %v195, 4294901760
    %197 = vmatmul.f32.gmra.mxu0 %v196
    %v198 = vpop.f32.mrf.mxu0
    %v199 = vadd.f32 0.0, %v198
    %v200 = vand.u32 %v116, 4294901760
    %v201 = vsub.f32 %v116, %v200
    %v202 = vand.u32 %v201, 4294901760
    %v203 = vsub.f32 %v201, %v202
    %v204 = vand.u32 %v203, 4294901760
    %205 = vmatmul.f32.gmra.mxu0 %v204
    %v206 = vpop.f32.mrf.mxu0
    %v207 = vadd.f32 0.0, %v206
    %v208 = vand.u32 %v119, 4294901760
    %v209 = vsub.f32 %v119, %v208
    %v210 = vand.u32 %v209, 4294901760
    %v211 = vsub.f32 %v209, %v210
    %v212 = vand.u32 %v211, 4294901760
    %213 = vmatmul.f32.gmra.mxu0 %v212
    %v214 = vpop.f32.mrf.mxu0
    %v215 = vadd.f32 0.0, %v214
    %v216 = vand.u32 %v122, 4294901760
    %v217 = vsub.f32 %v122, %v216
    %v218 = vand.u32 %v217, 4294901760
    %v219 = vsub.f32 %v217, %v218
    %v220 = vand.u32 %v219, 4294901760
    %221 = vmatmul.f32.gmra.mxu0 %v220
    %v222 = vpop.f32.mrf.mxu0
    %v223 = vadd.f32 0.0, %v222
    %v224 = vand.u32 %v125, 4294901760
    %v225 = vsub.f32 %v125, %v224
    %v226 = vand.u32 %v225, 4294901760
    %v227 = vsub.f32 %v225, %v226
    %v228 = vand.u32 %v227, 4294901760
    %229 = vmatmul.f32.gmra.mxu0 %v228
    %v230 = vpop.f32.mrf.mxu0
    %v231 = vadd.f32 0.0, %v230
    %v232 = vand.u32 %v128, 4294901760
    %v233 = vsub.f32 %v128, %v232
    %v234 = vand.u32 %v233, 4294901760
    %v235 = vsub.f32 %v233, %v234
    %v236 = vand.u32 %v235, 4294901760
    %237 = vmatmul.f32.gmra.mxu0 %v236
    %v238 = vpop.f32.mrf.mxu0
    %v239 = vadd.f32 0.0, %v238
    %v240 = vand.u32 %v131, 4294901760
    %v241 = vsub.f32 %v131, %v240
    %v242 = vand.u32 %v241, 4294901760
    %v243 = vsub.f32 %v241, %v242
    %v244 = vand.u32 %v243, 4294901760
    %245 = vmatmul.f32.gmra.mxu0 %v244
    %v246 = vpop.f32.mrf.mxu0
    %v247 = vadd.f32 0.0, %v246
    %v248 = vand.u32 %v134, 4294901760
    %v249 = vsub.f32 %v134, %v248
    %v250 = vand.u32 %v249, 4294901760
    %v251 = vsub.f32 %v249, %v250
    %v252 = vand.u32 %v251, 4294901760
    %253 = vmatmul.f32.gmra.mxu0 %v252
    %v254 = vpop.f32.mrf.mxu0
    %v255 = vadd.f32 0.0, %v254
    %v256 = vand.u32 %v137, 4294901760
    %v257 = vsub.f32 %v137, %v256
    %v258 = vand.u32 %v257, 4294901760
    %v259 = vsub.f32 %v257, %v258
    %v260 = vand.u32 %v259, 4294901760
    %261 = vmatmul.f32.gmra.mxu0 %v260
    %v262 = vpop.f32.mrf.mxu0
    %v263 = vadd.f32 0.0, %v262
    %v264 = vand.u32 %v140, 4294901760
    %v265 = vsub.f32 %v140, %v264
    %v266 = vand.u32 %v265, 4294901760
    %v267 = vsub.f32 %v265, %v266
    %v268 = vand.u32 %v267, 4294901760
    %269 = vmatmul.f32.gmra.mxu0 %v268
    %v270 = vpop.f32.mrf.mxu0
    %v271 = vadd.f32 0.0, %v270
    %v272 = vand.u32 %v143, 4294901760
    %v273 = vsub.f32 %v143, %v272
    %v274 = vand.u32 %v273, 4294901760
    %v275 = vsub.f32 %v273, %v274
    %v276 = vand.u32 %v275, 4294901760
    %277 = vmatmul.f32.gmra.mxu0 %v276
    %v278 = vpop.f32.mrf.mxu0
    %v279 = vadd.f32 0.0, %v278
    %v280 = vand.u32 %v146, 4294901760
    %v281 = vsub.f32 %v146, %v280
    %v282 = vand.u32 %v281, 4294901760
    %v283 = vsub.f32 %v281, %v282
    %v284 = vand.u32 %v283, 4294901760
    %285 = vmatmul.f32.gmra.mxu0 %v284
    %v286 = vpop.f32.mrf.mxu0
    %v287 = vadd.f32 0.0, %v286
    %v288 = vand.u32 %v149, 4294901760
    %v289 = vsub.f32 %v149, %v288
    %v290 = vand.u32 %v289, 4294901760
    %v291 = vsub.f32 %v289, %v290
    %v292 = vand.u32 %v291, 4294901760
    %293 = vmatmul.f32.gmra.mxu0 %v292
    %v294 = vpop.f32.mrf.mxu0
    %v295 = vadd.f32 0.0, %v294
    %v296 = vand.u32 %v152, 4294901760
    %v297 = vsub.f32 %v152, %v296
    %v298 = vand.u32 %v297, 4294901760
    %v299 = vsub.f32 %v297, %v298
    %v300 = vand.u32 %v299, 4294901760
    %301 = vmatmul.f32.gmra.mxu0 %v300
    %v302 = vpop.f32.mrf.mxu0
    %v303 = vadd.f32 0.0, %v302
    %304 = vdwg.mxu0
    %305 = vmatpush.msra.mxu0 0.0
    %306 = vmatpush.msra.mxu0 0.0
    %307 = vmatpush.msra.mxu0 0.0
    %308 = vmatpush.msra.mxu0 0.0
    %309 = vmatpush.msra.mxu0 0.0
    %310 = vmatpush.msra.mxu0 0.0
    %311 = vmatpush.msra.mxu0 0.0
    %312 = vmatpush.msra.mxu0 0.0
    %313 = vmatpush.msra.mxu0 0.0
    %314 = vmatpush.msra.mxu0 0.0
    %v315 = vand.u32 %v79, 4294901760
    %v316 = vsub.f32 %v79, %v315
    %v317 = vand.u32 %v316, 4294901760
    %v318 = vsub.f32 %v316, %v317
    %v319 = vand.u32 %v318, 4294901760
    %320 = vmatpush.msra.mxu0 %v319
    %v321 = vand.u32 %v78, 4294901760
    %v322 = vsub.f32 %v78, %v321
    %v323 = vand.u32 %v322, 4294901760
    %v324 = vsub.f32 %v322, %v323
    %v325 = vand.u32 %v324, 4294901760
    %326 = vmatpush.msra.mxu0 %v325
    %v327 = vand.u32 %v77, 4294901760
    %v328 = vsub.f32 %v77, %v327
    %v329 = vand.u32 %v328, 4294901760
    %v330 = vsub.f32 %v328, %v329
    %v331 = vand.u32 %v330, 4294901760
    %332 = vmatpush.msra.mxu0 %v331
    %v333 = vand.u32 %v76, 4294901760
    %v334 = vsub.f32 %v76, %v333
    %v335 = vand.u32 %v334, 4294901760
    %v336 = vsub.f32 %v334, %v335
    %v337 = vand.u32 %v336, 4294901760
    %338 = vmatpush.msra.mxu0 %v337
    %v339 = vand.u32 %v75, 4294901760
    %v340 = vsub.f32 %v75, %v339
    %v341 = vand.u32 %v340, 4294901760
    %v342 = vsub.f32 %v340, %v341
    %v343 = vand.u32 %v342, 4294901760
    %344 = vmatpush.msra.mxu0 %v343
    %v345 = vand.u32 %v74, 4294901760
    %v346 = vsub.f32 %v74, %v345
    %v347 = vand.u32 %v346, 4294901760
    %v348 = vsub.f32 %v346, %v347
    %v349 = vand.u32 %v348, 4294901760
    %350 = vmatpush.msra.mxu0 %v349
    %v351 = vand.u32 %v107, 4294901760
    %352 = vmatmul.f32.gmra.mxu0 %v351
    %v353 = vpop.f32.mrf.mxu0
    %v354 = vadd.f32 %v183, %v353
    %v355 = vand.u32 %v110, 4294901760
    %356 = vmatmul.f32.gmra.mxu0 %v355
    %v357 = vpop.f32.mrf.mxu0
    %v358 = vadd.f32 %v191, %v357
    %v359 = vand.u32 %v113, 4294901760
    %360 = vmatmul.f32.gmra.mxu0 %v359
    %v361 = vpop.f32.mrf.mxu0
    %v362 = vadd.f32 %v199, %v361
    %v363 = vand.u32 %v116, 4294901760
    %364 = vmatmul.f32.gmra.mxu0 %v363
    %v365 = vpop.f32.mrf.mxu0
    %v366 = vadd.f32 %v207, %v365
    %v367 = vand.u32 %v119, 4294901760
    %368 = vmatmul.f32.gmra.mxu0 %v367
    %v369 = vpop.f32.mrf.mxu0
    %v370 = vadd.f32 %v215, %v369
    %v371 = vand.u32 %v122, 4294901760
    %372 = vmatmul.f32.gmra.mxu0 %v371
    %v373 = vpop.f32.mrf.mxu0
    %v374 = vadd.f32 %v223, %v373
    %v375 = vand.u32 %v125, 4294901760
    %376 = vmatmul.f32.gmra.mxu0 %v375
    %v377 = vpop.f32.mrf.mxu0
    %v378 = vadd.f32 %v231, %v377
    %v379 = vand.u32 %v128, 4294901760
    %380 = vmatmul.f32.gmra.mxu0 %v379
    %v381 = vpop.f32.mrf.mxu0
    %v382 = vadd.f32 %v239, %v381
    %v383 = vand.u32 %v131, 4294901760
    %384 = vmatmul.f32.gmra.mxu0 %v383
    %v385 = vpop.f32.mrf.mxu0
    %v386 = vadd.f32 %v247, %v385
    %v387 = vand.u32 %v134, 4294901760
    %388 = vmatmul.f32.gmra.mxu0 %v387
    %v389 = vpop.f32.mrf.mxu0
    %v390 = vadd.f32 %v255, %v389
    %v391 = vand.u32 %v137, 4294901760
    %392 = vmatmul.f32.gmra.mxu0 %v391
    %v393 = vpop.f32.mrf.mxu0
    %v394 = vadd.f32 %v263, %v393
    %v395 = vand.u32 %v140, 4294901760
    %396 = vmatmul.f32.gmra.mxu0 %v395
    %v397 = vpop.f32.mrf.mxu0
    %v398 = vadd.f32 %v271, %v397
    %v399 = vand.u32 %v143, 4294901760
    %400 = vmatmul.f32.gmra.mxu0 %v399
    %v401 = vpop.f32.mrf.mxu0
    %v402 = vadd.f32 %v279, %v401
    %v403 = vand.u32 %v146, 4294901760
    %404 = vmatmul.f32.gmra.mxu0 %v403
    %v405 = vpop.f32.mrf.mxu0
    %v406 = vadd.f32 %v287, %v405
    %v407 = vand.u32 %v149, 4294901760
    %408 = vmatmul.f32.gmra.mxu0 %v407
    %v409 = vpop.f32.mrf.mxu0
    %v410 = vadd.f32 %v295, %v409
    %v411 = vand.u32 %v152, 4294901760
    %412 = vmatmul.f32.gmra.mxu0 %v411
    %v413 = vpop.f32.mrf.mxu0
    %v414 = vadd.f32 %v303, %v413
    %415 = vdwg.mxu0
    %416 = vmatpush.msra.mxu0 0.0
    %417 = vmatpush.msra.mxu0 0.0
    %418 = vmatpush.msra.mxu0 0.0
    %419 = vmatpush.msra.mxu0 0.0
    %420 = vmatpush.msra.mxu0 0.0
    %421 = vmatpush.msra.mxu0 0.0
    %422 = vmatpush.msra.mxu0 0.0
    %423 = vmatpush.msra.mxu0 0.0
    %424 = vmatpush.msra.mxu0 0.0
    %425 = vmatpush.msra.mxu0 0.0
    %v426 = vand.u32 %v79, 4294901760
    %v427 = vsub.f32 %v79, %v426
    %428 = vmatpush.msra.mxu0 %v427
    %v429 = vand.u32 %v78, 4294901760
    %v430 = vsub.f32 %v78, %v429
    %431 = vmatpush.msra.mxu0 %v430
    %v432 = vand.u32 %v77, 4294901760
    %v433 = vsub.f32 %v77, %v432
    %434 = vmatpush.msra.mxu0 %v433
    %v435 = vand.u32 %v76, 4294901760
    %v436 = vsub.f32 %v76, %v435
    %437 = vmatpush.msra.mxu0 %v436
    %v438 = vand.u32 %v75, 4294901760
    %v439 = vsub.f32 %v75, %v438
    %440 = vmatpush.msra.mxu0 %v439
    %v441 = vand.u32 %v74, 4294901760
    %v442 = vsub.f32 %v74, %v441
    %443 = vmatpush.msra.mxu0 %v442
    %v444 = vand.u32 %v107, 4294901760
    %v445 = vsub.f32 %v107, %v444
    %446 = vmatmul.f32.gmra.mxu0 %v445
    %v447 = vpop.f32.mrf.mxu0
    %v448 = vadd.f32 %v354, %v447
    %v449 = vand.u32 %v110, 4294901760
    %v450 = vsub.f32 %v110, %v449
    %451 = vmatmul.f32.gmra.mxu0 %v450
    %v452 = vpop.f32.mrf.mxu0
    %v453 = vadd.f32 %v358, %v452
    %v454 = vand.u32 %v113, 4294901760
    %v455 = vsub.f32 %v113, %v454
    %456 = vmatmul.f32.gmra.mxu0 %v455
    %v457 = vpop.f32.mrf.mxu0
    %v458 = vadd.f32 %v362, %v457
    %v459 = vand.u32 %v116, 4294901760
    %v460 = vsub.f32 %v116, %v459
    %461 = vmatmul.f32.gmra.mxu0 %v460
    %v462 = vpop.f32.mrf.mxu0
    %v463 = vadd.f32 %v366, %v462
    %v464 = vand.u32 %v119, 4294901760
    %v465 = vsub.f32 %v119, %v464
    %466 = vmatmul.f32.gmra.mxu0 %v465
    %v467 = vpop.f32.mrf.mxu0
    %v468 = vadd.f32 %v370, %v467
    %v469 = vand.u32 %v122, 4294901760
    %v470 = vsub.f32 %v122, %v469
    %471 = vmatmul.f32.gmra.mxu0 %v470
    %v472 = vpop.f32.mrf.mxu0
    %v473 = vadd.f32 %v374, %v472
    %v474 = vand.u32 %v125, 4294901760
    %v475 = vsub.f32 %v125, %v474
    %476 = vmatmul.f32.gmra.mxu0 %v475
    %v477 = vpop.f32.mrf.mxu0
    %v478 = vadd.f32 %v378, %v477
    %v479 = vand.u32 %v128, 4294901760
    %v480 = vsub.f32 %v128, %v479
    %481 = vmatmul.f32.gmra.mxu0 %v480
    %v482 = vpop.f32.mrf.mxu0
    %v483 = vadd.f32 %v382, %v482
    %v484 = vand.u32 %v131, 4294901760
    %v485 = vsub.f32 %v131, %v484
    %486 = vmatmul.f32.gmra.mxu0 %v485
    %v487 = vpop.f32.mrf.mxu0
    %v488 = vadd.f32 %v386, %v487
    %v489 = vand.u32 %v134, 4294901760
    %v490 = vsub.f32 %v134, %v489
    %491 = vmatmul.f32.gmra.mxu0 %v490
    %v492 = vpop.f32.mrf.mxu0
    %v493 = vadd.f32 %v390, %v492
    %v494 = vand.u32 %v137, 4294901760
    %v495 = vsub.f32 %v137, %v494
    %496 = vmatmul.f32.gmra.mxu0 %v495
    %v497 = vpop.f32.mrf.mxu0
    %v498 = vadd.f32 %v394, %v497
    %v499 = vand.u32 %v140, 4294901760
    %v500 = vsub.f32 %v140, %v499
    %501 = vmatmul.f32.gmra.mxu0 %v500
    %v502 = vpop.f32.mrf.mxu0
    %v503 = vadd.f32 %v398, %v502
    %v504 = vand.u32 %v143, 4294901760
    %v505 = vsub.f32 %v143, %v504
    %506 = vmatmul.f32.gmra.mxu0 %v505
    %v507 = vpop.f32.mrf.mxu0
    %v508 = vadd.f32 %v402, %v507
    %v509 = vand.u32 %v146, 4294901760
    %v510 = vsub.f32 %v146, %v509
    %511 = vmatmul.f32.gmra.mxu0 %v510
    %v512 = vpop.f32.mrf.mxu0
    %v513 = vadd.f32 %v406, %v512
    %v514 = vand.u32 %v149, 4294901760
    %v515 = vsub.f32 %v149, %v514
    %516 = vmatmul.f32.gmra.mxu0 %v515
    %v517 = vpop.f32.mrf.mxu0
    %v518 = vadd.f32 %v410, %v517
    %v519 = vand.u32 %v152, 4294901760
    %v520 = vsub.f32 %v152, %v519
    %521 = vmatmul.f32.gmra.mxu0 %v520
    %v522 = vpop.f32.mrf.mxu0
    %v523 = vadd.f32 %v414, %v522
    %524 = vdwg.mxu0
    %525 = vmatpush.msra.mxu0 0.0
    %526 = vmatpush.msra.mxu0 0.0
    %527 = vmatpush.msra.mxu0 0.0
    %528 = vmatpush.msra.mxu0 0.0
    %529 = vmatpush.msra.mxu0 0.0
    %530 = vmatpush.msra.mxu0 0.0
    %531 = vmatpush.msra.mxu0 0.0
    %532 = vmatpush.msra.mxu0 0.0
    %533 = vmatpush.msra.mxu0 0.0
    %534 = vmatpush.msra.mxu0 0.0
    %v535 = vand.u32 %v79, 4294901760
    %536 = vmatpush.msra.mxu0 %v535
    %v537 = vand.u32 %v78, 4294901760
    %538 = vmatpush.msra.mxu0 %v537
    %v539 = vand.u32 %v77, 4294901760
    %540 = vmatpush.msra.mxu0 %v539
    %v541 = vand.u32 %v76, 4294901760
    %542 = vmatpush.msra.mxu0 %v541
    %v543 = vand.u32 %v75, 4294901760
    %544 = vmatpush.msra.mxu0 %v543
    %v545 = vand.u32 %v74, 4294901760
    %546 = vmatpush.msra.mxu0 %v545
    %v547 = vand.u32 %v107, 4294901760
    %v548 = vsub.f32 %v107, %v547
    %v549 = vand.u32 %v548, 4294901760
    %550 = vmatmul.f32.gmra.mxu0 %v549
    %v551 = vpop.f32.mrf.mxu0
    %v552 = vadd.f32 %v448, %v551
    %v553 = vand.u32 %v110, 4294901760
    %v554 = vsub.f32 %v110, %v553
    %v555 = vand.u32 %v554, 4294901760
    %556 = vmatmul.f32.gmra.mxu0 %v555
    %v557 = vpop.f32.mrf.mxu0
    %v558 = vadd.f32 %v453, %v557
    %v559 = vand.u32 %v113, 4294901760
    %v560 = vsub.f32 %v113, %v559
    %v561 = vand.u32 %v560, 4294901760
    %562 = vmatmul.f32.gmra.mxu0 %v561
    %v563 = vpop.f32.mrf.mxu0
    %v564 = vadd.f32 %v458, %v563
    %v565 = vand.u32 %v116, 4294901760
    %v566 = vsub.f32 %v116, %v565
    %v567 = vand.u32 %v566, 4294901760
    %568 = vmatmul.f32.gmra.mxu0 %v567
    %v569 = vpop.f32.mrf.mxu0
    %v570 = vadd.f32 %v463, %v569
    %v571 = vand.u32 %v119, 4294901760
    %v572 = vsub.f32 %v119, %v571
    %v573 = vand.u32 %v572, 4294901760
    %574 = vmatmul.f32.gmra.mxu0 %v573
    %v575 = vpop.f32.mrf.mxu0
    %v576 = vadd.f32 %v468, %v575
    %v577 = vand.u32 %v122, 4294901760
    %v578 = vsub.f32 %v122, %v577
    %v579 = vand.u32 %v578, 4294901760
    %580 = vmatmul.f32.gmra.mxu0 %v579
    %v581 = vpop.f32.mrf.mxu0
    %v582 = vadd.f32 %v473, %v581
    %v583 = vand.u32 %v125, 4294901760
    %v584 = vsub.f32 %v125, %v583
    %v585 = vand.u32 %v584, 4294901760
    %586 = vmatmul.f32.gmra.mxu0 %v585
    %v587 = vpop.f32.mrf.mxu0
    %v588 = vadd.f32 %v478, %v587
    %v589 = vand.u32 %v128, 4294901760
    %v590 = vsub.f32 %v128, %v589
    %v591 = vand.u32 %v590, 4294901760
    %592 = vmatmul.f32.gmra.mxu0 %v591
    %v593 = vpop.f32.mrf.mxu0
    %v594 = vadd.f32 %v483, %v593
    %v595 = vand.u32 %v131, 4294901760
    %v596 = vsub.f32 %v131, %v595
    %v597 = vand.u32 %v596, 4294901760
    %598 = vmatmul.f32.gmra.mxu0 %v597
    %v599 = vpop.f32.mrf.mxu0
    %v600 = vadd.f32 %v488, %v599
    %v601 = vand.u32 %v134, 4294901760
    %v602 = vsub.f32 %v134, %v601
    %v603 = vand.u32 %v602, 4294901760
    %604 = vmatmul.f32.gmra.mxu0 %v603
    %v605 = vpop.f32.mrf.mxu0
    %v606 = vadd.f32 %v493, %v605
    %v607 = vand.u32 %v137, 4294901760
    %v608 = vsub.f32 %v137, %v607
    %v609 = vand.u32 %v608, 4294901760
    %610 = vmatmul.f32.gmra.mxu0 %v609
    %v611 = vpop.f32.mrf.mxu0
    %v612 = vadd.f32 %v498, %v611
    %v613 = vand.u32 %v140, 4294901760
    %v614 = vsub.f32 %v140, %v613
    %v615 = vand.u32 %v614, 4294901760
    %616 = vmatmul.f32.gmra.mxu0 %v615
    %v617 = vpop.f32.mrf.mxu0
    %v618 = vadd.f32 %v503, %v617
    %v619 = vand.u32 %v143, 4294901760
    %v620 = vsub.f32 %v143, %v619
    %v621 = vand.u32 %v620, 4294901760
    %622 = vmatmul.f32.gmra.mxu0 %v621
    %v623 = vpop.f32.mrf.mxu0
    %v624 = vadd.f32 %v508, %v623
    %v625 = vand.u32 %v146, 4294901760
    %v626 = vsub.f32 %v146, %v625
    %v627 = vand.u32 %v626, 4294901760
    %628 = vmatmul.f32.gmra.mxu0 %v627
    %v629 = vpop.f32.mrf.mxu0
    %v630 = vadd.f32 %v513, %v629
    %v631 = vand.u32 %v149, 4294901760
    %v632 = vsub.f32 %v149, %v631
    %v633 = vand.u32 %v632, 4294901760
    %634 = vmatmul.f32.gmra.mxu0 %v633
    %v635 = vpop.f32.mrf.mxu0
    %v636 = vadd.f32 %v518, %v635
    %v637 = vand.u32 %v152, 4294901760
    %v638 = vsub.f32 %v152, %v637
    %v639 = vand.u32 %v638, 4294901760
    %640 = vmatmul.f32.gmra.mxu0 %v639
    %v641 = vpop.f32.mrf.mxu0
    %v642 = vadd.f32 %v523, %v641
    %643 = vdwg.mxu0
    %644 = vmatpush.msra.mxu0 0.0
    %645 = vmatpush.msra.mxu0 0.0
    %646 = vmatpush.msra.mxu0 0.0
    %647 = vmatpush.msra.mxu0 0.0
    %648 = vmatpush.msra.mxu0 0.0
    %649 = vmatpush.msra.mxu0 0.0
    %650 = vmatpush.msra.mxu0 0.0
    %651 = vmatpush.msra.mxu0 0.0
    %652 = vmatpush.msra.mxu0 0.0
    %653 = vmatpush.msra.mxu0 0.0
    %v654 = vand.u32 %v79, 4294901760
    %v655 = vsub.f32 %v79, %v654
    %v656 = vand.u32 %v655, 4294901760
    %657 = vmatpush.msra.mxu0 %v656
    %v658 = vand.u32 %v78, 4294901760
    %v659 = vsub.f32 %v78, %v658
    %v660 = vand.u32 %v659, 4294901760
    %661 = vmatpush.msra.mxu0 %v660
    %v662 = vand.u32 %v77, 4294901760
    %v663 = vsub.f32 %v77, %v662
    %v664 = vand.u32 %v663, 4294901760
    %665 = vmatpush.msra.mxu0 %v664
    %v666 = vand.u32 %v76, 4294901760
    %v667 = vsub.f32 %v76, %v666
    %v668 = vand.u32 %v667, 4294901760
    %669 = vmatpush.msra.mxu0 %v668
    %v670 = vand.u32 %v75, 4294901760
    %v671 = vsub.f32 %v75, %v670
    %v672 = vand.u32 %v671, 4294901760
    %673 = vmatpush.msra.mxu0 %v672
    %v674 = vand.u32 %v74, 4294901760
    %v675 = vsub.f32 %v74, %v674
    %v676 = vand.u32 %v675, 4294901760
    %677 = vmatpush.msra.mxu0 %v676
    %v678 = vand.u32 %v107, 4294901760
    %679 = vmatmul.f32.gmra.mxu0 %v678
    %v680 = vpop.f32.mrf.mxu0
    %v681 = vadd.f32 %v552, %v680
    %v682 = vand.u32 %v110, 4294901760
    %683 = vmatmul.f32.gmra.mxu0 %v682
    %v684 = vpop.f32.mrf.mxu0
    %v685 = vadd.f32 %v558, %v684
    %v686 = vand.u32 %v113, 4294901760
    %687 = vmatmul.f32.gmra.mxu0 %v686
    %v688 = vpop.f32.mrf.mxu0
    %v689 = vadd.f32 %v564, %v688
    %v690 = vand.u32 %v116, 4294901760
    %691 = vmatmul.f32.gmra.mxu0 %v690
    %v692 = vpop.f32.mrf.mxu0
    %v693 = vadd.f32 %v570, %v692
    %v694 = vand.u32 %v119, 4294901760
    %695 = vmatmul.f32.gmra.mxu0 %v694
    %v696 = vpop.f32.mrf.mxu0
    %v697 = vadd.f32 %v576, %v696
    %v698 = vand.u32 %v122, 4294901760
    %699 = vmatmul.f32.gmra.mxu0 %v698
    %v700 = vpop.f32.mrf.mxu0
    %v701 = vadd.f32 %v582, %v700
    %v702 = vand.u32 %v125, 4294901760
    %703 = vmatmul.f32.gmra.mxu0 %v702
    %v704 = vpop.f32.mrf.mxu0
    %v705 = vadd.f32 %v588, %v704
    %v706 = vand.u32 %v128, 4294901760
    %707 = vmatmul.f32.gmra.mxu0 %v706
    %v708 = vpop.f32.mrf.mxu0
    %v709 = vadd.f32 %v594, %v708
    %v710 = vand.u32 %v131, 4294901760
    %711 = vmatmul.f32.gmra.mxu0 %v710
    %v712 = vpop.f32.mrf.mxu0
    %v713 = vadd.f32 %v600, %v712
    %v714 = vand.u32 %v134, 4294901760
    %715 = vmatmul.f32.gmra.mxu0 %v714
    %v716 = vpop.f32.mrf.mxu0
    %v717 = vadd.f32 %v606, %v716
    %v718 = vand.u32 %v137, 4294901760
    %719 = vmatmul.f32.gmra.mxu0 %v718
    %v720 = vpop.f32.mrf.mxu0
    %v721 = vadd.f32 %v612, %v720
    %v722 = vand.u32 %v140, 4294901760
    %723 = vmatmul.f32.gmra.mxu0 %v722
    %v724 = vpop.f32.mrf.mxu0
    %v725 = vadd.f32 %v618, %v724
    %v726 = vand.u32 %v143, 4294901760
    %727 = vmatmul.f32.gmra.mxu0 %v726
    %v728 = vpop.f32.mrf.mxu0
    %v729 = vadd.f32 %v624, %v728
    %v730 = vand.u32 %v146, 4294901760
    %731 = vmatmul.f32.gmra.mxu0 %v730
    %v732 = vpop.f32.mrf.mxu0
    %v733 = vadd.f32 %v630, %v732
    %v734 = vand.u32 %v149, 4294901760
    %735 = vmatmul.f32.gmra.mxu0 %v734
    %v736 = vpop.f32.mrf.mxu0
    %v737 = vadd.f32 %v636, %v736
    %v738 = vand.u32 %v152, 4294901760
    %739 = vmatmul.f32.gmra.mxu0 %v738
    %v740 = vpop.f32.mrf.mxu0
    %v741 = vadd.f32 %v642, %v740
    %742 = vdwg.mxu0
    %743 = vmatpush.msra.mxu0 0.0
    %744 = vmatpush.msra.mxu0 0.0
    %745 = vmatpush.msra.mxu0 0.0
    %746 = vmatpush.msra.mxu0 0.0
    %747 = vmatpush.msra.mxu0 0.0
    %748 = vmatpush.msra.mxu0 0.0
    %749 = vmatpush.msra.mxu0 0.0
    %750 = vmatpush.msra.mxu0 0.0
    %751 = vmatpush.msra.mxu0 0.0
    %752 = vmatpush.msra.mxu0 0.0
    %v753 = vand.u32 %v79, 4294901760
    %754 = vmatpush.msra.mxu0 %v753
    %v755 = vand.u32 %v78, 4294901760
    %756 = vmatpush.msra.mxu0 %v755
    %v757 = vand.u32 %v77, 4294901760
    %758 = vmatpush.msra.mxu0 %v757
    %v759 = vand.u32 %v76, 4294901760
    %760 = vmatpush.msra.mxu0 %v759
    %v761 = vand.u32 %v75, 4294901760
    %762 = vmatpush.msra.mxu0 %v761
    %v763 = vand.u32 %v74, 4294901760
    %764 = vmatpush.msra.mxu0 %v763
    %v765 = vand.u32 %v107, 4294901760
    %766 = vmatmul.f32.gmra.mxu0 %v765
    %v767 = vpop.f32.mrf.mxu0
    %v768 = vadd.f32 %v681, %v767
    %v769 = vand.u32 %v110, 4294901760
    %770 = vmatmul.f32.gmra.mxu0 %v769
    %v771 = vpop.f32.mrf.mxu0
    %v772 = vadd.f32 %v685, %v771
    %v773 = vand.u32 %v113, 4294901760
    %774 = vmatmul.f32.gmra.mxu0 %v773
    %v775 = vpop.f32.mrf.mxu0
    %v776 = vadd.f32 %v689, %v775
    %v777 = vand.u32 %v116, 4294901760
    %778 = vmatmul.f32.gmra.mxu0 %v777
    %v779 = vpop.f32.mrf.mxu0
    %v780 = vadd.f32 %v693, %v779
    %v781 = vand.u32 %v119, 4294901760
    %782 = vmatmul.f32.gmra.mxu0 %v781
    %v783 = vpop.f32.mrf.mxu0
    %v784 = vadd.f32 %v697, %v783
    %v785 = vand.u32 %v122, 4294901760
    %786 = vmatmul.f32.gmra.mxu0 %v785
    %v787 = vpop.f32.mrf.mxu0
    %v788 = vadd.f32 %v701, %v787
    %v789 = vand.u32 %v125, 4294901760
    %790 = vmatmul.f32.gmra.mxu0 %v789
    %v791 = vpop.f32.mrf.mxu0
    %v792 = vadd.f32 %v705, %v791
    %v793 = vand.u32 %v128, 4294901760
    %794 = vmatmul.f32.gmra.mxu0 %v793
    %v795 = vpop.f32.mrf.mxu0
    %v796 = vadd.f32 %v709, %v795
    %v797 = vand.u32 %v131, 4294901760
    %798 = vmatmul.f32.gmra.mxu0 %v797
    %v799 = vpop.f32.mrf.mxu0
    %v800 = vadd.f32 %v713, %v799
    %v801 = vand.u32 %v134, 4294901760
    %802 = vmatmul.f32.gmra.mxu0 %v801
    %v803 = vpop.f32.mrf.mxu0
    %v804 = vadd.f32 %v717, %v803
    %v805 = vand.u32 %v137, 4294901760
    %806 = vmatmul.f32.gmra.mxu0 %v805
    %v807 = vpop.f32.mrf.mxu0
    %v808 = vadd.f32 %v721, %v807
    %v809 = vand.u32 %v140, 4294901760
    %810 = vmatmul.f32.gmra.mxu0 %v809
    %v811 = vpop.f32.mrf.mxu0
    %v812 = vadd.f32 %v725, %v811
    %v813 = vand.u32 %v143, 4294901760
    %814 = vmatmul.f32.gmra.mxu0 %v813
    %v815 = vpop.f32.mrf.mxu0
    %v816 = vadd.f32 %v729, %v815
    %v817 = vand.u32 %v146, 4294901760
    %818 = vmatmul.f32.gmra.mxu0 %v817
    %v819 = vpop.f32.mrf.mxu0
    %v820 = vadd.f32 %v733, %v819
    %v821 = vand.u32 %v149, 4294901760
    %822 = vmatmul.f32.gmra.mxu0 %v821
    %v823 = vpop.f32.mrf.mxu0
    %v824 = vadd.f32 %v737, %v823
    %v825 = vand.u32 %v152, 4294901760
    %826 = vmatmul.f32.gmra.mxu0 %v825
    %v827 = vpop.f32.mrf.mxu0
    %v828 = vadd.f32 %v741, %v827
    %829 = vdwg.mxu0
    %830 = vmatpush.msra.mxu0 0.0
    %831 = vmatpush.msra.mxu0 0.0
    %832 = vmatpush.msra.mxu0 0.0
    %833 = vmatpush.msra.mxu0 0.0
    %834 = vmatpush.msra.mxu0 0.0
    %835 = vmatpush.msra.mxu0 0.0
    %836 = vmatpush.msra.mxu0 0.0
    %837 = vmatpush.msra.mxu0 0.0
    %838 = vmatpush.msra.mxu0 0.0
    %839 = vmatpush.msra.mxu0 0.0
    %v840 = vand.u32 %v104, 4294901760
    %841 = vmatpush.msra.mxu0 %v840
    %v842 = vand.u32 %v103, 4294901760
    %843 = vmatpush.msra.mxu0 %v842
    %v844 = vand.u32 %v102, 4294901760
    %845 = vmatpush.msra.mxu0 %v844
    %v846 = vand.u32 %v101, 4294901760
    %847 = vmatpush.msra.mxu0 %v846
    %v848 = vand.u32 %v100, 4294901760
    %849 = vmatpush.msra.mxu0 %v848
    %v850 = vand.u32 %v99, 4294901760
    %851 = vmatpush.msra.mxu0 %v850
    %v852 = vand.u32 %v107, 4294901760
    %v853 = vsub.f32 %v107, %v852
    %v854 = vand.u32 %v853, 4294901760
    %v855 = vsub.f32 %v853, %v854
    %v856 = vand.u32 %v855, 4294901760
    %857 = vmatmul.f32.gmra.mxu0 %v856
    %v858 = vpop.f32.mrf.mxu0
    %v859 = vadd.f32 0.0, %v858
    %v860 = vand.u32 %v110, 4294901760
    %v861 = vsub.f32 %v110, %v860
    %v862 = vand.u32 %v861, 4294901760
    %v863 = vsub.f32 %v861, %v862
    %v864 = vand.u32 %v863, 4294901760
    %865 = vmatmul.f32.gmra.mxu0 %v864
    %v866 = vpop.f32.mrf.mxu0
    %v867 = vadd.f32 0.0, %v866
    %v868 = vand.u32 %v113, 4294901760
    %v869 = vsub.f32 %v113, %v868
    %v870 = vand.u32 %v869, 4294901760
    %v871 = vsub.f32 %v869, %v870
    %v872 = vand.u32 %v871, 4294901760
    %873 = vmatmul.f32.gmra.mxu0 %v872
    %v874 = vpop.f32.mrf.mxu0
    %v875 = vadd.f32 0.0, %v874
    %v876 = vand.u32 %v116, 4294901760
    %v877 = vsub.f32 %v116, %v876
    %v878 = vand.u32 %v877, 4294901760
    %v879 = vsub.f32 %v877, %v878
    %v880 = vand.u32 %v879, 4294901760
    %881 = vmatmul.f32.gmra.mxu0 %v880
    %v882 = vpop.f32.mrf.mxu0
    %v883 = vadd.f32 0.0, %v882
    %v884 = vand.u32 %v119, 4294901760
    %v885 = vsub.f32 %v119, %v884
    %v886 = vand.u32 %v885, 4294901760
    %v887 = vsub.f32 %v885, %v886
    %v888 = vand.u32 %v887, 4294901760
    %889 = vmatmul.f32.gmra.mxu0 %v888
    %v890 = vpop.f32.mrf.mxu0
    %v891 = vadd.f32 0.0, %v890
    %v892 = vand.u32 %v122, 4294901760
    %v893 = vsub.f32 %v122, %v892
    %v894 = vand.u32 %v893, 4294901760
    %v895 = vsub.f32 %v893, %v894
    %v896 = vand.u32 %v895, 4294901760
    %897 = vmatmul.f32.gmra.mxu0 %v896
    %v898 = vpop.f32.mrf.mxu0
    %v899 = vadd.f32 0.0, %v898
    %v900 = vand.u32 %v125, 4294901760
    %v901 = vsub.f32 %v125, %v900
    %v902 = vand.u32 %v901, 4294901760
    %v903 = vsub.f32 %v901, %v902
    %v904 = vand.u32 %v903, 4294901760
    %905 = vmatmul.f32.gmra.mxu0 %v904
    %v906 = vpop.f32.mrf.mxu0
    %v907 = vadd.f32 0.0, %v906
    %v908 = vand.u32 %v128, 4294901760
    %v909 = vsub.f32 %v128, %v908
    %v910 = vand.u32 %v909, 4294901760
    %v911 = vsub.f32 %v909, %v910
    %v912 = vand.u32 %v911, 4294901760
    %913 = vmatmul.f32.gmra.mxu0 %v912
    %v914 = vpop.f32.mrf.mxu0
    %v915 = vadd.f32 0.0, %v914
    %v916 = vand.u32 %v131, 4294901760
    %v917 = vsub.f32 %v131, %v916
    %v918 = vand.u32 %v917, 4294901760
    %v919 = vsub.f32 %v917, %v918
    %v920 = vand.u32 %v919, 4294901760
    %921 = vmatmul.f32.gmra.mxu0 %v920
    %v922 = vpop.f32.mrf.mxu0
    %v923 = vadd.f32 0.0, %v922
    %v924 = vand.u32 %v134, 4294901760
    %v925 = vsub.f32 %v134, %v924
    %v926 = vand.u32 %v925, 4294901760
    %v927 = vsub.f32 %v925, %v926
    %v928 = vand.u32 %v927, 4294901760
    %929 = vmatmul.f32.gmra.mxu0 %v928
    %v930 = vpop.f32.mrf.mxu0
    %v931 = vadd.f32 0.0, %v930
    %v932 = vand.u32 %v137, 4294901760
    %v933 = vsub.f32 %v137, %v932
    %v934 = vand.u32 %v933, 4294901760
    %v935 = vsub.f32 %v933, %v934
    %v936 = vand.u32 %v935, 4294901760
    %937 = vmatmul.f32.gmra.mxu0 %v936
    %v938 = vpop.f32.mrf.mxu0
    %v939 = vadd.f32 0.0, %v938
    %v940 = vand.u32 %v140, 4294901760
    %v941 = vsub.f32 %v140, %v940
    %v942 = vand.u32 %v941, 4294901760
    %v943 = vsub.f32 %v941, %v942
    %v944 = vand.u32 %v943, 4294901760
    %945 = vmatmul.f32.gmra.mxu0 %v944
    %v946 = vpop.f32.mrf.mxu0
    %v947 = vadd.f32 0.0, %v946
    %v948 = vand.u32 %v143, 4294901760
    %v949 = vsub.f32 %v143, %v948
    %v950 = vand.u32 %v949, 4294901760
    %v951 = vsub.f32 %v949, %v950
    %v952 = vand.u32 %v951, 4294901760
    %953 = vmatmul.f32.gmra.mxu0 %v952
    %v954 = vpop.f32.mrf.mxu0
    %v955 = vadd.f32 0.0, %v954
    %v956 = vand.u32 %v146, 4294901760
    %v957 = vsub.f32 %v146, %v956
    %v958 = vand.u32 %v957, 4294901760
    %v959 = vsub.f32 %v957, %v958
    %v960 = vand.u32 %v959, 4294901760
    %961 = vmatmul.f32.gmra.mxu0 %v960
    %v962 = vpop.f32.mrf.mxu0
    %v963 = vadd.f32 0.0, %v962
    %v964 = vand.u32 %v149, 4294901760
    %v965 = vsub.f32 %v149, %v964
    %v966 = vand.u32 %v965, 4294901760
    %v967 = vsub.f32 %v965, %v966
    %v968 = vand.u32 %v967, 4294901760
    %969 = vmatmul.f32.gmra.mxu0 %v968
    %v970 = vpop.f32.mrf.mxu0
    %v971 = vadd.f32 0.0, %v970
    %v972 = vand.u32 %v152, 4294901760
    %v973 = vsub.f32 %v152, %v972
    %v974 = vand.u32 %v973, 4294901760
    %v975 = vsub.f32 %v973, %v974
    %v976 = vand.u32 %v975, 4294901760
    %977 = vmatmul.f32.gmra.mxu0 %v976
    %v978 = vpop.f32.mrf.mxu0
    %v979 = vadd.f32 0.0, %v978
    %980 = vdwg.mxu0
    %981 = vmatpush.msra.mxu0 0.0
    %982 = vmatpush.msra.mxu0 0.0
    %983 = vmatpush.msra.mxu0 0.0
    %984 = vmatpush.msra.mxu0 0.0
    %985 = vmatpush.msra.mxu0 0.0
    %986 = vmatpush.msra.mxu0 0.0
    %987 = vmatpush.msra.mxu0 0.0
    %988 = vmatpush.msra.mxu0 0.0
    %989 = vmatpush.msra.mxu0 0.0
    %990 = vmatpush.msra.mxu0 0.0
    %v991 = vand.u32 %v104, 4294901760
    %v992 = vsub.f32 %v104, %v991
    %v993 = vand.u32 %v992, 4294901760
    %v994 = vsub.f32 %v992, %v993
    %v995 = vand.u32 %v994, 4294901760
    %996 = vmatpush.msra.mxu0 %v995
    %v997 = vand.u32 %v103, 4294901760
    %v998 = vsub.f32 %v103, %v997
    %v999 = vand.u32 %v998, 4294901760
    %v1000 = vsub.f32 %v998, %v999
    %v1001 = vand.u32 %v1000, 4294901760
    %1002 = vmatpush.msra.mxu0 %v1001
    %v1003 = vand.u32 %v102, 4294901760
    %v1004 = vsub.f32 %v102, %v1003
    %v1005 = vand.u32 %v1004, 4294901760
    %v1006 = vsub.f32 %v1004, %v1005
    %v1007 = vand.u32 %v1006, 4294901760
    %1008 = vmatpush.msra.mxu0 %v1007
    %v1009 = vand.u32 %v101, 4294901760
    %v1010 = vsub.f32 %v101, %v1009
    %v1011 = vand.u32 %v1010, 4294901760
    %v1012 = vsub.f32 %v1010, %v1011
    %v1013 = vand.u32 %v1012, 4294901760
    %1014 = vmatpush.msra.mxu0 %v1013
    %v1015 = vand.u32 %v100, 4294901760
    %v1016 = vsub.f32 %v100, %v1015
    %v1017 = vand.u32 %v1016, 4294901760
    %v1018 = vsub.f32 %v1016, %v1017
    %v1019 = vand.u32 %v1018, 4294901760
    %1020 = vmatpush.msra.mxu0 %v1019
    %v1021 = vand.u32 %v99, 4294901760
    %v1022 = vsub.f32 %v99, %v1021
    %v1023 = vand.u32 %v1022, 4294901760
    %v1024 = vsub.f32 %v1022, %v1023
    %v1025 = vand.u32 %v1024, 4294901760
    %1026 = vmatpush.msra.mxu0 %v1025
    %v1027 = vand.u32 %v107, 4294901760
    %1028 = vmatmul.f32.gmra.mxu0 %v1027
    %v1029 = vpop.f32.mrf.mxu0
    %v1030 = vadd.f32 %v859, %v1029
    %v1031 = vand.u32 %v110, 4294901760
    %1032 = vmatmul.f32.gmra.mxu0 %v1031
    %v1033 = vpop.f32.mrf.mxu0
    %v1034 = vadd.f32 %v867, %v1033
    %v1035 = vand.u32 %v113, 4294901760
    %1036 = vmatmul.f32.gmra.mxu0 %v1035
    %v1037 = vpop.f32.mrf.mxu0
    %v1038 = vadd.f32 %v875, %v1037
    %v1039 = vand.u32 %v116, 4294901760
    %1040 = vmatmul.f32.gmra.mxu0 %v1039
    %v1041 = vpop.f32.mrf.mxu0
    %v1042 = vadd.f32 %v883, %v1041
    %v1043 = vand.u32 %v119, 4294901760
    %1044 = vmatmul.f32.gmra.mxu0 %v1043
    %v1045 = vpop.f32.mrf.mxu0
    %v1046 = vadd.f32 %v891, %v1045
    %v1047 = vand.u32 %v122, 4294901760
    %1048 = vmatmul.f32.gmra.mxu0 %v1047
    %v1049 = vpop.f32.mrf.mxu0
    %v1050 = vadd.f32 %v899, %v1049
    %v1051 = vand.u32 %v125, 4294901760
    %1052 = vmatmul.f32.gmra.mxu0 %v1051
    %v1053 = vpop.f32.mrf.mxu0
    %v1054 = vadd.f32 %v907, %v1053
    %v1055 = vand.u32 %v128, 4294901760
    %1056 = vmatmul.f32.gmra.mxu0 %v1055
    %v1057 = vpop.f32.mrf.mxu0
    %v1058 = vadd.f32 %v915, %v1057
    %v1059 = vand.u32 %v131, 4294901760
    %1060 = vmatmul.f32.gmra.mxu0 %v1059
    %v1061 = vpop.f32.mrf.mxu0
    %v1062 = vadd.f32 %v923, %v1061
    %v1063 = vand.u32 %v134, 4294901760
    %1064 = vmatmul.f32.gmra.mxu0 %v1063
    %v1065 = vpop.f32.mrf.mxu0
    %v1066 = vadd.f32 %v931, %v1065
    %v1067 = vand.u32 %v137, 4294901760
    %1068 = vmatmul.f32.gmra.mxu0 %v1067
    %v1069 = vpop.f32.mrf.mxu0
    %v1070 = vadd.f32 %v939, %v1069
    %v1071 = vand.u32 %v140, 4294901760
    %1072 = vmatmul.f32.gmra.mxu0 %v1071
    %v1073 = vpop.f32.mrf.mxu0
    %v1074 = vadd.f32 %v947, %v1073
    %v1075 = vand.u32 %v143, 4294901760
    %1076 = vmatmul.f32.gmra.mxu0 %v1075
    %v1077 = vpop.f32.mrf.mxu0
    %v1078 = vadd.f32 %v955, %v1077
    %v1079 = vand.u32 %v146, 4294901760
    %1080 = vmatmul.f32.gmra.mxu0 %v1079
    %v1081 = vpop.f32.mrf.mxu0
    %v1082 = vadd.f32 %v963, %v1081
    %v1083 = vand.u32 %v149, 4294901760
    %1084 = vmatmul.f32.gmra.mxu0 %v1083
    %v1085 = vpop.f32.mrf.mxu0
    %v1086 = vadd.f32 %v971, %v1085
    %v1087 = vand.u32 %v152, 4294901760
    %1088 = vmatmul.f32.gmra.mxu0 %v1087
    %v1089 = vpop.f32.mrf.mxu0
    %v1090 = vadd.f32 %v979, %v1089
    %1091 = vdwg.mxu0
    %1092 = vmatpush.msra.mxu0 0.0
    %1093 = vmatpush.msra.mxu0 0.0
    %1094 = vmatpush.msra.mxu0 0.0
    %1095 = vmatpush.msra.mxu0 0.0
    %1096 = vmatpush.msra.mxu0 0.0
    %1097 = vmatpush.msra.mxu0 0.0
    %1098 = vmatpush.msra.mxu0 0.0
    %1099 = vmatpush.msra.mxu0 0.0
    %1100 = vmatpush.msra.mxu0 0.0
    %1101 = vmatpush.msra.mxu0 0.0
    %v1102 = vand.u32 %v104, 4294901760
    %v1103 = vsub.f32 %v104, %v1102
    %1104 = vmatpush.msra.mxu0 %v1103
    %v1105 = vand.u32 %v103, 4294901760
    %v1106 = vsub.f32 %v103, %v1105
    %1107 = vmatpush.msra.mxu0 %v1106
    %v1108 = vand.u32 %v102, 4294901760
    %v1109 = vsub.f32 %v102, %v1108
    %1110 = vmatpush.msra.mxu0 %v1109
    %v1111 = vand.u32 %v101, 4294901760
    %v1112 = vsub.f32 %v101, %v1111
    %1113 = vmatpush.msra.mxu0 %v1112
    %v1114 = vand.u32 %v100, 4294901760
    %v1115 = vsub.f32 %v100, %v1114
    %1116 = vmatpush.msra.mxu0 %v1115
    %v1117 = vand.u32 %v99, 4294901760
    %v1118 = vsub.f32 %v99, %v1117
    %1119 = vmatpush.msra.mxu0 %v1118
    %v1120 = vand.u32 %v107, 4294901760
    %v1121 = vsub.f32 %v107, %v1120
    %1122 = vmatmul.f32.gmra.mxu0 %v1121
    %v1123 = vpop.f32.mrf.mxu0
    %v1124 = vadd.f32 %v1030, %v1123
    %v1125 = vand.u32 %v110, 4294901760
    %v1126 = vsub.f32 %v110, %v1125
    %1127 = vmatmul.f32.gmra.mxu0 %v1126
    %v1128 = vpop.f32.mrf.mxu0
    %v1129 = vadd.f32 %v1034, %v1128
    %v1130 = vand.u32 %v113, 4294901760
    %v1131 = vsub.f32 %v113, %v1130
    %1132 = vmatmul.f32.gmra.mxu0 %v1131
    %v1133 = vpop.f32.mrf.mxu0
    %v1134 = vadd.f32 %v1038, %v1133
    %v1135 = vand.u32 %v116, 4294901760
    %v1136 = vsub.f32 %v116, %v1135
    %1137 = vmatmul.f32.gmra.mxu0 %v1136
    %v1138 = vpop.f32.mrf.mxu0
    %v1139 = vadd.f32 %v1042, %v1138
    %v1140 = vand.u32 %v119, 4294901760
    %v1141 = vsub.f32 %v119, %v1140
    %1142 = vmatmul.f32.gmra.mxu0 %v1141
    %v1143 = vpop.f32.mrf.mxu0
    %v1144 = vadd.f32 %v1046, %v1143
    %v1145 = vand.u32 %v122, 4294901760
    %v1146 = vsub.f32 %v122, %v1145
    %1147 = vmatmul.f32.gmra.mxu0 %v1146
    %v1148 = vpop.f32.mrf.mxu0
    %v1149 = vadd.f32 %v1050, %v1148
    %v1150 = vand.u32 %v125, 4294901760
    %v1151 = vsub.f32 %v125, %v1150
    %1152 = vmatmul.f32.gmra.mxu0 %v1151
    %v1153 = vpop.f32.mrf.mxu0
    %v1154 = vadd.f32 %v1054, %v1153
    %v1155 = vand.u32 %v128, 4294901760
    %v1156 = vsub.f32 %v128, %v1155
    %1157 = vmatmul.f32.gmra.mxu0 %v1156
    %v1158 = vpop.f32.mrf.mxu0
    %v1159 = vadd.f32 %v1058, %v1158
    %v1160 = vand.u32 %v131, 4294901760
    %v1161 = vsub.f32 %v131, %v1160
    %1162 = vmatmul.f32.gmra.mxu0 %v1161
    %v1163 = vpop.f32.mrf.mxu0
    %v1164 = vadd.f32 %v1062, %v1163
    %v1165 = vand.u32 %v134, 4294901760
    %v1166 = vsub.f32 %v134, %v1165
    %1167 = vmatmul.f32.gmra.mxu0 %v1166
    %v1168 = vpop.f32.mrf.mxu0
    %v1169 = vadd.f32 %v1066, %v1168
    %v1170 = vand.u32 %v137, 4294901760
    %v1171 = vsub.f32 %v137, %v1170
    %1172 = vmatmul.f32.gmra.mxu0 %v1171
    %v1173 = vpop.f32.mrf.mxu0
    %v1174 = vadd.f32 %v1070, %v1173
    %v1175 = vand.u32 %v140, 4294901760
    %v1176 = vsub.f32 %v140, %v1175
    %1177 = vmatmul.f32.gmra.mxu0 %v1176
    %v1178 = vpop.f32.mrf.mxu0
    %v1179 = vadd.f32 %v1074, %v1178
    %v1180 = vand.u32 %v143, 4294901760
    %v1181 = vsub.f32 %v143, %v1180
    %1182 = vmatmul.f32.gmra.mxu0 %v1181
    %v1183 = vpop.f32.mrf.mxu0
    %v1184 = vadd.f32 %v1078, %v1183
    %v1185 = vand.u32 %v146, 4294901760
    %v1186 = vsub.f32 %v146, %v1185
    %1187 = vmatmul.f32.gmra.mxu0 %v1186
    %v1188 = vpop.f32.mrf.mxu0
    %v1189 = vadd.f32 %v1082, %v1188
    %v1190 = vand.u32 %v149, 4294901760
    %v1191 = vsub.f32 %v149, %v1190
    %1192 = vmatmul.f32.gmra.mxu0 %v1191
    %v1193 = vpop.f32.mrf.mxu0
    %v1194 = vadd.f32 %v1086, %v1193
    %v1195 = vand.u32 %v152, 4294901760
    %v1196 = vsub.f32 %v152, %v1195
    %1197 = vmatmul.f32.gmra.mxu0 %v1196
    %v1198 = vpop.f32.mrf.mxu0
    %v1199 = vadd.f32 %v1090, %v1198
    %1200 = vdwg.mxu0
    %1201 = vmatpush.msra.mxu0 0.0
    %1202 = vmatpush.msra.mxu0 0.0
    %1203 = vmatpush.msra.mxu0 0.0
    %1204 = vmatpush.msra.mxu0 0.0
    %1205 = vmatpush.msra.mxu0 0.0
    %1206 = vmatpush.msra.mxu0 0.0
    %1207 = vmatpush.msra.mxu0 0.0
    %1208 = vmatpush.msra.mxu0 0.0
    %1209 = vmatpush.msra.mxu0 0.0
    %1210 = vmatpush.msra.mxu0 0.0
    %v1211 = vand.u32 %v104, 4294901760
    %1212 = vmatpush.msra.mxu0 %v1211
    %v1213 = vand.u32 %v103, 4294901760
    %1214 = vmatpush.msra.mxu0 %v1213
    %v1215 = vand.u32 %v102, 4294901760
    %1216 = vmatpush.msra.mxu0 %v1215
    %v1217 = vand.u32 %v101, 4294901760
    %1218 = vmatpush.msra.mxu0 %v1217
    %v1219 = vand.u32 %v100, 4294901760
    %1220 = vmatpush.msra.mxu0 %v1219
    %v1221 = vand.u32 %v99, 4294901760
    %1222 = vmatpush.msra.mxu0 %v1221
    %v1223 = vand.u32 %v107, 4294901760
    %v1224 = vsub.f32 %v107, %v1223
    %v1225 = vand.u32 %v1224, 4294901760
    %1226 = vmatmul.f32.gmra.mxu0 %v1225
    %v1227 = vpop.f32.mrf.mxu0
    %v1228 = vadd.f32 %v1124, %v1227
    %v1229 = vand.u32 %v110, 4294901760
    %v1230 = vsub.f32 %v110, %v1229
    %v1231 = vand.u32 %v1230, 4294901760
    %1232 = vmatmul.f32.gmra.mxu0 %v1231
    %v1233 = vpop.f32.mrf.mxu0
    %v1234 = vadd.f32 %v1129, %v1233
    %v1235 = vand.u32 %v113, 4294901760
    %v1236 = vsub.f32 %v113, %v1235
    %v1237 = vand.u32 %v1236, 4294901760
    %1238 = vmatmul.f32.gmra.mxu0 %v1237
    %v1239 = vpop.f32.mrf.mxu0
    %v1240 = vadd.f32 %v1134, %v1239
    %v1241 = vand.u32 %v116, 4294901760
    %v1242 = vsub.f32 %v116, %v1241
    %v1243 = vand.u32 %v1242, 4294901760
    %1244 = vmatmul.f32.gmra.mxu0 %v1243
    %v1245 = vpop.f32.mrf.mxu0
    %v1246 = vadd.f32 %v1139, %v1245
    %v1247 = vand.u32 %v119, 4294901760
    %v1248 = vsub.f32 %v119, %v1247
    %v1249 = vand.u32 %v1248, 4294901760
    %1250 = vmatmul.f32.gmra.mxu0 %v1249
    %v1251 = vpop.f32.mrf.mxu0
    %v1252 = vadd.f32 %v1144, %v1251
    %v1253 = vand.u32 %v122, 4294901760
    %v1254 = vsub.f32 %v122, %v1253
    %v1255 = vand.u32 %v1254, 4294901760
    %1256 = vmatmul.f32.gmra.mxu0 %v1255
    %v1257 = vpop.f32.mrf.mxu0
    %v1258 = vadd.f32 %v1149, %v1257
    %v1259 = vand.u32 %v125, 4294901760
    %v1260 = vsub.f32 %v125, %v1259
    %v1261 = vand.u32 %v1260, 4294901760
    %1262 = vmatmul.f32.gmra.mxu0 %v1261
    %v1263 = vpop.f32.mrf.mxu0
    %v1264 = vadd.f32 %v1154, %v1263
    %v1265 = vand.u32 %v128, 4294901760
    %v1266 = vsub.f32 %v128, %v1265
    %v1267 = vand.u32 %v1266, 4294901760
    %1268 = vmatmul.f32.gmra.mxu0 %v1267
    %v1269 = vpop.f32.mrf.mxu0
    %v1270 = vadd.f32 %v1159, %v1269
    %v1271 = vand.u32 %v131, 4294901760
    %v1272 = vsub.f32 %v131, %v1271
    %v1273 = vand.u32 %v1272, 4294901760
    %1274 = vmatmul.f32.gmra.mxu0 %v1273
    %v1275 = vpop.f32.mrf.mxu0
    %v1276 = vadd.f32 %v1164, %v1275
    %v1277 = vand.u32 %v134, 4294901760
    %v1278 = vsub.f32 %v134, %v1277
    %v1279 = vand.u32 %v1278, 4294901760
    %1280 = vmatmul.f32.gmra.mxu0 %v1279
    %v1281 = vpop.f32.mrf.mxu0
    %v1282 = vadd.f32 %v1169, %v1281
    %v1283 = vand.u32 %v137, 4294901760
    %v1284 = vsub.f32 %v137, %v1283
    %v1285 = vand.u32 %v1284, 4294901760
    %1286 = vmatmul.f32.gmra.mxu0 %v1285
    %v1287 = vpop.f32.mrf.mxu0
    %v1288 = vadd.f32 %v1174, %v1287
    %v1289 = vand.u32 %v140, 4294901760
    %v1290 = vsub.f32 %v140, %v1289
    %v1291 = vand.u32 %v1290, 4294901760
    %1292 = vmatmul.f32.gmra.mxu0 %v1291
    %v1293 = vpop.f32.mrf.mxu0
    %v1294 = vadd.f32 %v1179, %v1293
    %v1295 = vand.u32 %v143, 4294901760
    %v1296 = vsub.f32 %v143, %v1295
    %v1297 = vand.u32 %v1296, 4294901760
    %1298 = vmatmul.f32.gmra.mxu0 %v1297
    %v1299 = vpop.f32.mrf.mxu0
    %v1300 = vadd.f32 %v1184, %v1299
    %v1301 = vand.u32 %v146, 4294901760
    %v1302 = vsub.f32 %v146, %v1301
    %v1303 = vand.u32 %v1302, 4294901760
    %1304 = vmatmul.f32.gmra.mxu0 %v1303
    %v1305 = vpop.f32.mrf.mxu0
    %v1306 = vadd.f32 %v1189, %v1305
    %v1307 = vand.u32 %v149, 4294901760
    %v1308 = vsub.f32 %v149, %v1307
    %v1309 = vand.u32 %v1308, 4294901760
    %1310 = vmatmul.f32.gmra.mxu0 %v1309
    %v1311 = vpop.f32.mrf.mxu0
    %v1312 = vadd.f32 %v1194, %v1311
    %v1313 = vand.u32 %v152, 4294901760
    %v1314 = vsub.f32 %v152, %v1313
    %v1315 = vand.u32 %v1314, 4294901760
    %1316 = vmatmul.f32.gmra.mxu0 %v1315
    %v1317 = vpop.f32.mrf.mxu0
    %v1318 = vadd.f32 %v1199, %v1317
    %1319 = vdwg.mxu0
    %1320 = vmatpush.msra.mxu0 0.0
    %1321 = vmatpush.msra.mxu0 0.0
    %1322 = vmatpush.msra.mxu0 0.0
    %1323 = vmatpush.msra.mxu0 0.0
    %1324 = vmatpush.msra.mxu0 0.0
    %1325 = vmatpush.msra.mxu0 0.0
    %1326 = vmatpush.msra.mxu0 0.0
    %1327 = vmatpush.msra.mxu0 0.0
    %1328 = vmatpush.msra.mxu0 0.0
    %1329 = vmatpush.msra.mxu0 0.0
    %v1330 = vand.u32 %v104, 4294901760
    %v1331 = vsub.f32 %v104, %v1330
    %v1332 = vand.u32 %v1331, 4294901760
    %1333 = vmatpush.msra.mxu0 %v1332
    %v1334 = vand.u32 %v103, 4294901760
    %v1335 = vsub.f32 %v103, %v1334
    %v1336 = vand.u32 %v1335, 4294901760
    %1337 = vmatpush.msra.mxu0 %v1336
    %v1338 = vand.u32 %v102, 4294901760
    %v1339 = vsub.f32 %v102, %v1338
    %v1340 = vand.u32 %v1339, 4294901760
    %1341 = vmatpush.msra.mxu0 %v1340
    %v1342 = vand.u32 %v101, 4294901760
    %v1343 = vsub.f32 %v101, %v1342
    %v1344 = vand.u32 %v1343, 4294901760
    %1345 = vmatpush.msra.mxu0 %v1344
    %v1346 = vand.u32 %v100, 4294901760
    %v1347 = vsub.f32 %v100, %v1346
    %v1348 = vand.u32 %v1347, 4294901760
    %1349 = vmatpush.msra.mxu0 %v1348
    %v1350 = vand.u32 %v99, 4294901760
    %v1351 = vsub.f32 %v99, %v1350
    %v1352 = vand.u32 %v1351, 4294901760
    %1353 = vmatpush.msra.mxu0 %v1352
    %v1354 = vand.u32 %v107, 4294901760
    %1355 = vmatmul.f32.gmra.mxu0 %v1354
    %v1356 = vpop.f32.mrf.mxu0
    %v1357 = vadd.f32 %v1228, %v1356
    %v1358 = vand.u32 %v110, 4294901760
    %1359 = vmatmul.f32.gmra.mxu0 %v1358
    %v1360 = vpop.f32.mrf.mxu0
    %v1361 = vadd.f32 %v1234, %v1360
    %v1362 = vand.u32 %v113, 4294901760
    %1363 = vmatmul.f32.gmra.mxu0 %v1362
    %v1364 = vpop.f32.mrf.mxu0
    %v1365 = vadd.f32 %v1240, %v1364
    %v1366 = vand.u32 %v116, 4294901760
    %1367 = vmatmul.f32.gmra.mxu0 %v1366
    %v1368 = vpop.f32.mrf.mxu0
    %v1369 = vadd.f32 %v1246, %v1368
    %v1370 = vand.u32 %v119, 4294901760
    %1371 = vmatmul.f32.gmra.mxu0 %v1370
    %v1372 = vpop.f32.mrf.mxu0
    %v1373 = vadd.f32 %v1252, %v1372
    %v1374 = vand.u32 %v122, 4294901760
    %1375 = vmatmul.f32.gmra.mxu0 %v1374
    %v1376 = vpop.f32.mrf.mxu0
    %v1377 = vadd.f32 %v1258, %v1376
    %v1378 = vand.u32 %v125, 4294901760
    %1379 = vmatmul.f32.gmra.mxu0 %v1378
    %v1380 = vpop.f32.mrf.mxu0
    %v1381 = vadd.f32 %v1264, %v1380
    %v1382 = vand.u32 %v128, 4294901760
    %1383 = vmatmul.f32.gmra.mxu0 %v1382
    %v1384 = vpop.f32.mrf.mxu0
    %v1385 = vadd.f32 %v1270, %v1384
    %v1386 = vand.u32 %v131, 4294901760
    %1387 = vmatmul.f32.gmra.mxu0 %v1386
    %v1388 = vpop.f32.mrf.mxu0
    %v1389 = vadd.f32 %v1276, %v1388
    %v1390 = vand.u32 %v134, 4294901760
    %1391 = vmatmul.f32.gmra.mxu0 %v1390
    %v1392 = vpop.f32.mrf.mxu0
    %v1393 = vadd.f32 %v1282, %v1392
    %v1394 = vand.u32 %v137, 4294901760
    %1395 = vmatmul.f32.gmra.mxu0 %v1394
    %v1396 = vpop.f32.mrf.mxu0
    %v1397 = vadd.f32 %v1288, %v1396
    %v1398 = vand.u32 %v140, 4294901760
    %1399 = vmatmul.f32.gmra.mxu0 %v1398
    %v1400 = vpop.f32.mrf.mxu0
    %v1401 = vadd.f32 %v1294, %v1400
    %v1402 = vand.u32 %v143, 4294901760
    %1403 = vmatmul.f32.gmra.mxu0 %v1402
    %v1404 = vpop.f32.mrf.mxu0
    %v1405 = vadd.f32 %v1300, %v1404
    %v1406 = vand.u32 %v146, 4294901760
    %1407 = vmatmul.f32.gmra.mxu0 %v1406
    %v1408 = vpop.f32.mrf.mxu0
    %v1409 = vadd.f32 %v1306, %v1408
    %v1410 = vand.u32 %v149, 4294901760
    %1411 = vmatmul.f32.gmra.mxu0 %v1410
    %v1412 = vpop.f32.mrf.mxu0
    %v1413 = vadd.f32 %v1312, %v1412
    %v1414 = vand.u32 %v152, 4294901760
    %1415 = vmatmul.f32.gmra.mxu0 %v1414
    %v1416 = vpop.f32.mrf.mxu0
    %v1417 = vadd.f32 %v1318, %v1416
    %1418 = vdwg.mxu0
    %1419 = vmatpush.msra.mxu0 0.0
    %1420 = vmatpush.msra.mxu0 0.0
    %1421 = vmatpush.msra.mxu0 0.0
    %1422 = vmatpush.msra.mxu0 0.0
    %1423 = vmatpush.msra.mxu0 0.0
    %1424 = vmatpush.msra.mxu0 0.0
    %1425 = vmatpush.msra.mxu0 0.0
    %1426 = vmatpush.msra.mxu0 0.0
    %1427 = vmatpush.msra.mxu0 0.0
    %1428 = vmatpush.msra.mxu0 0.0
    %v1429 = vand.u32 %v104, 4294901760
    %1430 = vmatpush.msra.mxu0 %v1429
    %v1431 = vand.u32 %v103, 4294901760
    %1432 = vmatpush.msra.mxu0 %v1431
    %v1433 = vand.u32 %v102, 4294901760
    %1434 = vmatpush.msra.mxu0 %v1433
    %v1435 = vand.u32 %v101, 4294901760
    %1436 = vmatpush.msra.mxu0 %v1435
    %v1437 = vand.u32 %v100, 4294901760
    %1438 = vmatpush.msra.mxu0 %v1437
    %v1439 = vand.u32 %v99, 4294901760
    %1440 = vmatpush.msra.mxu0 %v1439
    %v1441 = vand.u32 %v107, 4294901760
    %1442 = vmatmul.f32.gmra.mxu0 %v1441
    %v1443 = vpop.f32.mrf.mxu0
    %v1444 = vadd.f32 %v1357, %v1443
    %v1445 = vand.u32 %v110, 4294901760
    %1446 = vmatmul.f32.gmra.mxu0 %v1445
    %v1447 = vpop.f32.mrf.mxu0
    %v1448 = vadd.f32 %v1361, %v1447
    %v1449 = vand.u32 %v113, 4294901760
    %1450 = vmatmul.f32.gmra.mxu0 %v1449
    %v1451 = vpop.f32.mrf.mxu0
    %v1452 = vadd.f32 %v1365, %v1451
    %v1453 = vand.u32 %v116, 4294901760
    %1454 = vmatmul.f32.gmra.mxu0 %v1453
    %v1455 = vpop.f32.mrf.mxu0
    %v1456 = vadd.f32 %v1369, %v1455
    %v1457 = vand.u32 %v119, 4294901760
    %1458 = vmatmul.f32.gmra.mxu0 %v1457
    %v1459 = vpop.f32.mrf.mxu0
    %v1460 = vadd.f32 %v1373, %v1459
    %v1461 = vand.u32 %v122, 4294901760
    %1462 = vmatmul.f32.gmra.mxu0 %v1461
    %v1463 = vpop.f32.mrf.mxu0
    %v1464 = vadd.f32 %v1377, %v1463
    %v1465 = vand.u32 %v125, 4294901760
    %1466 = vmatmul.f32.gmra.mxu0 %v1465
    %v1467 = vpop.f32.mrf.mxu0
    %v1468 = vadd.f32 %v1381, %v1467
    %v1469 = vand.u32 %v128, 4294901760
    %1470 = vmatmul.f32.gmra.mxu0 %v1469
    %v1471 = vpop.f32.mrf.mxu0
    %v1472 = vadd.f32 %v1385, %v1471
    %v1473 = vand.u32 %v131, 4294901760
    %1474 = vmatmul.f32.gmra.mxu0 %v1473
    %v1475 = vpop.f32.mrf.mxu0
    %v1476 = vadd.f32 %v1389, %v1475
    %v1477 = vand.u32 %v134, 4294901760
    %1478 = vmatmul.f32.gmra.mxu0 %v1477
    %v1479 = vpop.f32.mrf.mxu0
    %v1480 = vadd.f32 %v1393, %v1479
    %v1481 = vand.u32 %v137, 4294901760
    %1482 = vmatmul.f32.gmra.mxu0 %v1481
    %v1483 = vpop.f32.mrf.mxu0
    %v1484 = vadd.f32 %v1397, %v1483
    %v1485 = vand.u32 %v140, 4294901760
    %1486 = vmatmul.f32.gmra.mxu0 %v1485
    %v1487 = vpop.f32.mrf.mxu0
    %v1488 = vadd.f32 %v1401, %v1487
    %v1489 = vand.u32 %v143, 4294901760
    %1490 = vmatmul.f32.gmra.mxu0 %v1489
    %v1491 = vpop.f32.mrf.mxu0
    %v1492 = vadd.f32 %v1405, %v1491
    %v1493 = vand.u32 %v146, 4294901760
    %1494 = vmatmul.f32.gmra.mxu0 %v1493
    %v1495 = vpop.f32.mrf.mxu0
    %v1496 = vadd.f32 %v1409, %v1495
    %v1497 = vand.u32 %v149, 4294901760
    %1498 = vmatmul.f32.gmra.mxu0 %v1497
    %v1499 = vpop.f32.mrf.mxu0
    %v1500 = vadd.f32 %v1413, %v1499
    %v1501 = vand.u32 %v152, 4294901760
    %1502 = vmatmul.f32.gmra.mxu0 %v1501
    %v1503 = vpop.f32.mrf.mxu0
    %v1504 = vadd.f32 %v1417, %v1503
    %1505 = vdwg.mxu0
    %v1506 = vmul.f32 %v768, %v768
    %v1507 = vmul.f32 %v1444, %v1444
    %v1508 = vmul.f32 %v772, %v772
    %v1509 = vmul.f32 %v1448, %v1448
    %v1510 = vmul.f32 %v776, %v776
    %v1511 = vmul.f32 %v1452, %v1452
    %v1512 = vmul.f32 %v780, %v780
    %v1513 = vmul.f32 %v1456, %v1456
    %v1514 = vmul.f32 %v784, %v784
    %v1515 = vmul.f32 %v1460, %v1460
    %v1516 = vmul.f32 %v788, %v788
    %v1517 = vmul.f32 %v1464, %v1464
    %v1518 = vmul.f32 %v792, %v792
    %v1519 = vmul.f32 %v1468, %v1468
    %v1520 = vmul.f32 %v796, %v796
    %v1521 = vmul.f32 %v1472, %v1472
    %v1522 = vmul.f32 %v800, %v800
    %v1523 = vmul.f32 %v1476, %v1476
    %v1524 = vmul.f32 %v804, %v804
    %v1525 = vmul.f32 %v1480, %v1480
    %v1526 = vmul.f32 %v808, %v808
    %v1527 = vmul.f32 %v1484, %v1484
    %v1528 = vmul.f32 %v812, %v812
    %v1529 = vmul.f32 %v1488, %v1488
    %v1530 = vmul.f32 %v816, %v816
    %v1531 = vmul.f32 %v1492, %v1492
    %v1532 = vmul.f32 %v820, %v820
    %v1533 = vmul.f32 %v1496, %v1496
    %v1534 = vmul.f32 %v824, %v824
    %v1535 = vmul.f32 %v1500, %v1500
    %v1536 = vmul.f32 %v828, %v828
    %v1537 = vmul.f32 %v1504, %v1504
    %v1538 = vadd.f32 %v1506, %v1508
    %v1539 = vadd.f32 %v1538, %v1510
    %v1540 = vadd.f32 %v1539, %v1512
    %v1541 = vadd.f32 %v1540, %v1514
    %v1542 = vadd.f32 %v1541, %v1516
    %v1543 = vadd.f32 %v1542, %v1518
    %v1544 = vadd.f32 %v1543, %v1520
    %v1545 = vadd.f32 %v1544, %v1522
    %v1546 = vadd.f32 %v1545, %v1524
    %v1547 = vadd.f32 %v1546, %v1526
    %v1548 = vadd.f32 %v1547, %v1528
    %v1549 = vadd.f32 %v1548, %v1530
    %v1550 = vadd.f32 %v1549, %v1532
    %v1551 = vadd.f32 %v1550, %v1534
    %v1552 = vadd.f32 %v1551, %v1536
    %v1553 = vrot.slane %v1552, 4
    %v1554 = vadd.f32 %v1552, %v1553
    %v1555 = vrot.slane %v1554, 2
    %v1556 = vadd.f32 %v1554, %v1555
    %v1557 = vrot.slane %v1556, 1
    %v1558 = vadd.f32 %v1556, %v1557
    %v1559 = vadd.f32 %v1507, %v1509
    %v1560 = vadd.f32 %v1559, %v1511
    %v1561 = vadd.f32 %v1560, %v1513
    %v1562 = vadd.f32 %v1561, %v1515
    %v1563 = vadd.f32 %v1562, %v1517
    %v1564 = vadd.f32 %v1563, %v1519
    %v1565 = vadd.f32 %v1564, %v1521
    %v1566 = vadd.f32 %v1565, %v1523
    %v1567 = vadd.f32 %v1566, %v1525
    %v1568 = vadd.f32 %v1567, %v1527
    %v1569 = vadd.f32 %v1568, %v1529
    %v1570 = vadd.f32 %v1569, %v1531
    %v1571 = vadd.f32 %v1570, %v1533
    %v1572 = vadd.f32 %v1571, %v1535
    %v1573 = vadd.f32 %v1572, %v1537
    %v1574 = vrot.slane %v1573, 4
    %v1575 = vadd.f32 %v1573, %v1574
    %v1576 = vrot.slane %v1575, 2
    %v1577 = vadd.f32 %v1575, %v1576
    %v1578 = vrot.slane %v1577, 1
    %v1579 = vadd.f32 %v1577, %v1578
    %v1580 = vrsqrt.pop %v1558
    %v1581 = vmul.f32 %v1580, %v1558
    %v1582 = vmul.f32 %v1581, %v1580
    %v1583 = vmul.f32 0.5, %v1582
    %v1584 = vsub.f32 1.5, %v1583
    %v1585 = vmul.f32 %v1580, %v1584
    %v1586 = vmul.f32 %v1558, %v1585
    %vm1587 = vcmp.eq.f32.partialorder %v1558, inf
    %v1588 = vsel %vm1587, %v1558, %v1586
    %vm1589 = vcmp.eq.f32.partialorder %v1558, 0.0
    %v1590 = vand.u32 %v1558, 2147483648
    %v1591 = vsel %vm1589, %v1590, %v1588
    %v1592 = vrsqrt.pop %v1579
    %v1593 = vmul.f32 %v1592, %v1579
    %v1594 = vmul.f32 %v1593, %v1592
    %v1595 = vmul.f32 0.5, %v1594
    %v1596 = vsub.f32 1.5, %v1595
    %v1597 = vmul.f32 %v1592, %v1596
    %v1598 = vmul.f32 %v1579, %v1597
    %vm1599 = vcmp.eq.f32.partialorder %v1579, inf
    %v1600 = vsel %vm1599, %v1579, %v1598
    %vm1601 = vcmp.eq.f32.partialorder %v1579, 0.0
    %v1602 = vand.u32 %v1579, 2147483648
    %v1603 = vsel %vm1601, %v1602, %v1600
    %vm1604 = vcmask 1040384
    %v1605 = vsel %vm1604, %v1591, %v1603
    %1606 = vst [vmem:[#allocation2] sm:$0x3] %v1605
    // Predicated region
    $region10: #{tpu_custom_call.1} parent=1 // pred_check
      _
    $region11: #{tpu_custom_call.1} parent=1 // pred_check_branch
      %1608 = sbr.rel (0) target = $region13
    $region12: #{tpu_custom_call.1} parent=1 // pred_region
      %1610 = vsyncadd [#allocation3], 0
      %s1612 = sshll.u32 [#allocation2], 4
      %s1613 = int_to_ptr.vmem [resolvable:$true] %s1612
      %s1614 = sshll.u32 %s2, 4
      %s1615 = int_to_ptr.hbm [resolvable:$true] %s1614
      %1617 = dma.vmem_to_hbm [thread:$0]  %s1613, 32, %s1615, [#allocation3]
    $region13: #{tpu_custom_call.1} parent=1 // pred_fallthru
      _
    // Predicated region
    $region14: #{tpu_custom_call.1} parent=1 // pred_check
      _
    $region15: #{tpu_custom_call.1} parent=1 // pred_check_branch
      %1619 = sbr.rel (0) target = $region17
    $region16: #{tpu_custom_call.1} parent=1 // pred_region
      %1621 = dma.done [#allocation3], 32
    $region17: #{tpu_custom_call.1} parent=1 // pred_fallthru
      _
    %1622 = vsyncpa [#allocation3], 1

</llo_original>
